<compile_context>
chip_gen: v7x
topology: tpu7x:2x2x1
jax: 0.10.0
libtpu: 0.0.40
codegen_flags: <defaults>
</compile_context>

<pallas_src>
import math

import jax
import jax.numpy as jnp
import numpy as np
from jax.experimental import pallas as pl
from jax.experimental.pallas import tpu as pltpu

KMAX = 5                 # every primitive conv kernel is centred/zero-padded to width 5
PAD = (KMAX - 1) // 2    # 'same' padding on each side


def _round_up(v, m):
    return (v + m - 1) // m * m


# ----------------------------------------------------------------------------
# One-time prepare: fold alphas / 1/N / biases into block-diagonal per-level
# weights.  Call OUTSIDE jit with concrete params (hoisted per the review).
# ----------------------------------------------------------------------------
def prepare_cell(params, alphas, C, operation_number, ops_number,
                 compute_dtype=jnp.float32):
    n = operation_number
    if math.factorial(n) != n * (n + 1) // 2:
        # The reference sizes function_list with factorial(n); the relu/sigmoid
        # split is only well defined when that equals n(n+1)/2 (n in {1, 3}).
        raise NotImplementedError(
            "reference relu/sigmoid split only defined for operation_number in {1, 3}")

    channel_list = [32] * (n + 1)
    channel_list[0] = C
    channel_list[-1] = 1

    cin_list = channel_list[:n]                        # input channels of nodes 0..n-1
    cin_pad = [_round_up(c, 8) for c in cin_list]      # sublane-aligned k-bands
    seg_rows = [_round_up(KMAX * p + 1, 8) for p in cin_pad]   # +1 ones/bias row
    seg_start = [0]
    for r in seg_rows[:-1]:
        seg_start.append(seg_start[-1] + r)
    total_rows = int(sum(seg_rows))

    fused_w = []
    gate_alpha = None
    m = 0
    for i in range(n):
        cout = channel_list[i + 1]
        is_last = (i == n - 1)
        ncols = int(sum(seg_rows[:i + 1]))
        Wf = np.zeros(((i + 1) * ops_number * cout, ncols), np.float32)
        if is_last:
            ga = np.zeros(((i + 1) * ops_number * cout, 1), np.float32)
        for j in range(i + 1):
            w = np.asarray(params[m][0], np.float32)   # (ops, KMAX, cin, cout)
            b = np.asarray(params[m][1], np.float32)   # (ops, 1, cout)
            a = np.asarray(alphas[m], np.float32)      # (ops,)
            cin, cp, cs = cin_list[j], cin_pad[j], seg_start[j]
            for op in range(ops_number):
                r0 = j * ops_number * cout + op * cout
                if is_last:
                    scale = 1.0
                    ga[r0:r0 + cout, 0] = a[op] / n    # 1/N folded into gate alphas
                else:
                    # alpha*relu(Wx+b) == relu(alpha*Wx + alpha*b) needs alpha > 0
                    assert float(a[op]) > 0.0, "alpha folding requires softmax alphas > 0"
                    scale = float(a[op])
                wop = np.zeros((cout, KMAX, cp), np.float32)
                wop[:, :, :cin] = np.transpose(w[op], (2, 0, 1))   # (cout, KMAX, cin)
                Wf[r0:r0 + cout, cs:cs + KMAX * cp] = scale * wop.reshape(cout, -1)
                Wf[r0:r0 + cout, cs + KMAX * cp] = scale * b[op, 0, :]   # bias column
            m += 1
        fused_w.append(jnp.asarray(Wf, dtype=compute_dtype))
        if is_last:
            gate_alpha = jnp.asarray(ga, dtype=jnp.float32)

    meta = dict(C=C, operation_number=n, ops_number=ops_number,
                channel_list=tuple(channel_list), cin_list=tuple(cin_list),
                cin_pad=tuple(cin_pad), seg_rows=tuple(seg_rows),
                seg_start=tuple(seg_start), total_rows=total_rows,
                compute_dtype=compute_dtype)
    return (tuple(fused_w), gate_alpha), meta


# ----------------------------------------------------------------------------
# Fused Pallas kernel: the entire Cell forward for one batch row.
# ----------------------------------------------------------------------------
def _make_cell_kernel(meta, L):
    n = meta["operation_number"]
    ops_n = meta["ops_number"]
    channel_list = meta["channel_list"]
    cin_list = meta["cin_list"]
    cin_pad = meta["cin_pad"]
    seg_rows = meta["seg_rows"]
    seg_start = meta["seg_start"]
    cdt = meta["compute_dtype"]

    def kernel(*refs):
        x_ref = refs[0]                    # (1, C, L)  f32
        w_refs = refs[1:1 + n]             # per-level block-diagonal fused weights
        ga_ref = refs[1 + n]               # (n*ops, 1) f32 sigmoid alphas (incl. 1/N)
        o_ref = refs[2 + n]                # (1, C, L)  f32
        col_ref = refs[3 + n]              # (total_rows, L) VMEM im2col slab

        def write_segment(node, src):
            # im2col of `src` (cin, L) into the slab segment of `node`:
            #   col[row0 + k*cin_pad + ci, l] = src[ci, l + k - PAD]
            # Only uncovered edge strips / channel-pad rows are zeroed; the
            # segment tail rows are set to 1.0 (bias row + alignment pad).
            cin = cin_list[node]
            cp = cin_pad[node]
            row0 = seg_start[node]
            rows = seg_rows[node]
            src = src.astype(cdt)
            for k in range(KMAX):
                base = row0 + k * cp
                shift = k - PAD                          # src col = dst col + shift
                dlo = min(L, max(0, -shift))
                dhi = max(dlo, min(L, L - shift))
                if dlo > 0:                              # left edge (zero)
                    col_ref[base:base + cin, 0:dlo] = jnp.zeros((cin, dlo), cdt)
                if dhi < L:                              # right edge (zero)
                    col_ref[base:base + cin, dhi:L] = jnp.zeros((cin, L - dhi), cdt)
                if dhi > dlo:                            # interior (shifted copy)
                    col_ref[base:base + cin, dlo:dhi] = src[:, dlo + shift:dhi + shift]
                if cp > cin:                             # channel-pad rows of this band
                    col_ref[base + cin:base + cp, :] = jnp.zeros((cp - cin, L), cdt)
            col_ref[row0 + KMAX * cp:row0 + rows, :] = (
                jnp.ones((rows - KMAX * cp, L), cdt))    # ones: bias row + row pad

        x = x_ref[0]                                     # (C, L): L on lanes
        write_segment(0, x)                              # node 0 = the cell input

        kcols = seg_rows[0]
        for i in range(n):
            cout = channel_list[i + 1]
            # One block-diagonal matmul per level: every (node, primitive) conv
            # of this level at once; bias via the ones rows, alphas pre-folded
            # for ReLU levels.
            y = jnp.dot(w_refs[i][...], col_ref[0:kcols, :],
                        preferred_element_type=jnp.float32)
            if i + 1 < n:
                act = jnp.maximum(y, 0.0)                # ReLU (alpha already in W)
                now = act[0:cout, :]
                for q in range(1, (i + 1) * ops_n):
                    now = now + act[q * cout:(q + 1) * cout, :]
                write_segment(i + 1, now)                # stays in VMEM, never to HBM
                kcols += seg_rows[i + 1]
            else:
                sig = jax.nn.sigmoid(y)                  # (n*ops, L); EUP transcendental
                ws = ga_ref[...] * sig                   # alpha/N weighted sigmoids
                gate = ws[0:1, :]
                for q in range(1, (i + 1) * ops_n):
                    gate = gate + ws[q:q + 1, :]         # (1, L)
                o_ref[0] = x * gate                      # broadcast gate over channels

    return kernel


# ----------------------------------------------------------------------------
# Wrapper
# ----------------------------------------------------------------------------
def cell_forward(x_bcl, fused_w, gate_alpha, meta):
    """Cell.forward for cell_type='TAM'.  x_bcl: (B, C, L), same as PyTorch NCL."""
    B, C, L = x_bcl.shape
    assert C == meta["C"]
    cdt = meta["compute_dtype"]
    total_rows = meta["total_rows"]

    kernel = _make_cell_kernel(meta, L)

    in_specs = ([pl.BlockSpec((1, C, L), lambda b: (b, 0, 0))]
                + [pl.BlockSpec(w.shape, lambda b: (0, 0)) for w in fused_w]
                + [pl.BlockSpec(gate_alpha.shape, lambda b: (0, 0))])
    out_specs = pl.BlockSpec((1, C, L), lambda b: (b, 0, 0))
    scratch_shapes = [pltpu.VMEM((total_rows, L), cdt)]

    # Explicit VMEM budget (review: v5e 16 MiB / v7x 32 MiB default scoped limits).
    itemsize = np.dtype(cdt).itemsize
    need = (total_rows * L * itemsize                                 # im2col slab
            + sum(int(np.prod(w.shape)) for w in fused_w) * itemsize  # fused weights
            + 2 * 2 * C * L * 4                                       # dbl-buffered x/out
            + (1 << 20))
    vmem_limit = int(min(64 << 20, max(32 << 20, 2 * need)))

    return pl.pallas_call(
        kernel,
        out_shape=jax.ShapeDtypeStruct((B, C, L), jnp.float32),
        grid=(B,),
        in_specs=in_specs,
        out_specs=out_specs,
        scratch_shapes=scratch_shapes,
        compiler_params=pltpu.CompilerParams(
            dimension_semantics=("parallel",),   # batch sharded over v7x's 2 TCs
            vmem_limit_bytes=vmem_limit),
    )(x_bcl.astype(jnp.float32), *fused_w, gate_alpha)


# ----------------------------------------------------------------------------
# Deterministic parameter construction (synthetic, no checkpoint load)
# ----------------------------------------------------------------------------
def make_cell_params(key, C, operation_number, ops_number):
    channel_list = [32] * (operation_number + 1)
    channel_list[0] = C
    channel_list[-1] = 1
    ksizes = [1, 3, 5][:ops_number]   # primitive conv kernel sizes
    params, alphas = [], []
    for i in range(operation_number):
        for j in range(i + 1):
            cin, cout = channel_list[j], channel_list[i + 1]
            ws, bs = [], []
            for p in range(ops_number):
                key, k1, k2 = jax.random.split(key, 3)
                ks = ksizes[p]
                off = (KMAX - ks) // 2
                w = jax.random.normal(k1, (ks, cin, cout), jnp.float32) * 0.1
                w = jnp.pad(w, ((off, KMAX - ks - off), (0, 0), (0, 0)))
                b = jax.random.normal(k2, (1, cout), jnp.float32) * 0.1
                ws.append(w)
                bs.append(b)
            params.append((jnp.stack(ws), jnp.stack(bs)))
            key, ka = jax.random.split(key)
            alphas.append(jax.nn.softmax(
                jax.random.normal(ka, (ops_number,), jnp.float32)))
    return params, alphas


# ----------------------------------------------------------------------------
# Pure-JAX reference (mirrors PyTorch semantics) for verification
# ----------------------------------------------------------------------------
def _ref_mixed_op(x_blc, w, b, alpha, act):
    out = 0.0
    for op in range(w.shape[0]):
        conv = jax.lax.conv_general_dilated(
            x_blc, w[op], window_strides=(1,), padding='SAME',
            dimension_numbers=('NWC', 'WIO', 'NWC')) + b[op]
        a = jax.nn.relu(conv) if act == 'relu' else jax.nn.sigmoid(conv)
        out = out + alpha[op] * a
    return out


def ref_cell(x_bcl, alphas, params, operation_number):
    x_blc = jnp.transpose(x_bcl, (0, 2, 1))
    functions = ['relu'] * math.factorial(operation_number)
    functions[-operation_number:] = ['sigmoid'] * operation_number
    total_x, total_index, add_x = [], 0, x_blc
    for i in range(operation_number):
        total_x.append(add_x)
        now_x = 0.0
        for j in range(i + 1):
            w, b = params[total_index]
            now_x = _ref_mixed_op(total_x[j], w, b, alphas[total_index],
                                  functions[total_index]) + now_x
            total_index += 1
        add_x = now_x
    gated = x_blc * (add_x / operation_number)
    return jnp.transpose(gated, (0, 2, 1))


# ----------------------------------------------------------------------------
if __name__ == "__main__":
    B, C, L = 2, 4, 16
    operation_number, ops_number = 3, 3

    key = jax.random.PRNGKey(0)
    key, kx, kp = jax.random.split(key, 3)
    x = jax.random.normal(kx, (B, C, L), jnp.float32)   # PyTorch NCL input
    params, alphas = make_cell_params(kp, C, operation_number, ops_number)

    # One-time repack (alphas, 1/N and biases folded into block-diagonal weights).
    # compute_dtype=jnp.bfloat16 is available for v6e/v7x throughput; keep f32 to
    # hold the 2e-5 reference tolerance.
    (fused_w, gate_alpha), meta = prepare_cell(
        params, alphas, C, operation_number, ops_number,
        compute_dtype=jnp.float32)

    fwd = jax.jit(lambda xx, fw, ga: cell_forward(xx, fw, ga, meta))
    out = jax.block_until_ready(fwd(x, fused_w, gate_alpha))

    ref = ref_cell(x, alphas, params, operation_number)
    np.testing.assert_allclose(np.asarray(out), np.asarray(ref),
                               rtol=2e-5, atol=2e-5)
    print("KERNEL_OK")
</pallas_src>

<mosaic_0001>
module attributes {stable_mosaic.version = 11 : i64} {
  func.func @kernel(%arg0: i32, %arg1: memref<1x4x16xf32, #tpu.memory_space<vmem>>, %arg2: memref<96x48xf32, #tpu.memory_space<vmem>>, %arg3: memref<192x216xf32, #tpu.memory_space<vmem>>, %arg4: memref<9x384xf32, #tpu.memory_space<vmem>>, %arg5: memref<9x1xf32, #tpu.memory_space<vmem>>, %arg6: memref<1x4x16xf32, #tpu.memory_space<vmem>>, %arg7: memref<384x16xf32, #tpu.memory_space<vmem>>) attributes {dimension_semantics = [#tpu.dimension_semantics<parallel>], iteration_bounds = array<i64: 2>, scalar_prefetch = 0 : i64, scratch_operands = 1 : i64, tpu.core_type = #tpu.core_type<tc>, window_params = [{transform_indices = @transform_0, window_bounds = array<i64: 1, 4, 16>}, {pipeline_mode = #tpu.pipeline_mode<synchronous>, transform_indices = @transform_1, window_bounds = array<i64: 96, 48>}, {pipeline_mode = #tpu.pipeline_mode<synchronous>, transform_indices = @transform_2, window_bounds = array<i64: 192, 216>}, {pipeline_mode = #tpu.pipeline_mode<synchronous>, transform_indices = @transform_3, window_bounds = array<i64: 9, 384>}, {pipeline_mode = #tpu.pipeline_mode<synchronous>, transform_indices = @transform_4, window_bounds = array<i64: 9, 1>}, {transform_indices = @transform_5, window_bounds = array<i64: 1, 4, 16>}]} {
    %c0 = arith.constant 0 : index
    %c0_0 = arith.constant 0 : index
    %c0_1 = arith.constant 0 : index
    %0 = vector.load %arg1[%c0, %c0_0, %c0_1] : memref<1x4x16xf32, #tpu.memory_space<vmem>>, vector<1x4x16xf32>
    %1 = vector.shape_cast %0 : vector<1x4x16xf32> to vector<4x16xf32>
    %cst = arith.constant 0.000000e+00 : f32
    %2 = vector.broadcast %cst : f32 to vector<4x2xf32>
    %c0_2 = arith.constant 0 : index
    %c0_3 = arith.constant 0 : index
    %3 = vector.load %arg7[%c0_2, %c0_3] : memref<384x16xf32, #tpu.memory_space<vmem>>, vector<4x2xf32>
    tpu.vector_store %arg7[%c0_2, %c0_3], %2 {strides = array<i32>} : memref<384x16xf32, #tpu.memory_space<vmem>>, vector<4x2xf32>,
    %4 = vector.extract_strided_slice %1 {offsets = [0, 0], sizes = [4, 14], strides = [1, 1]} : vector<4x16xf32> to vector<4x14xf32>
    %c0_4 = arith.constant 0 : index
    %c2 = arith.constant 2 : index
    %5 = vector.load %arg7[%c0_4, %c2] : memref<384x16xf32, #tpu.memory_space<vmem>>, vector<4x14xf32>
    tpu.vector_store %arg7[%c0_4, %c2], %4 {strides = array<i32>} : memref<384x16xf32, #tpu.memory_space<vmem>>, vector<4x14xf32>,
    %cst_5 = arith.constant 0.000000e+00 : f32
    %6 = vector.broadcast %cst_5 : f32 to vector<4x16xf32>
    %c4 = arith.constant 4 : index
    %c0_6 = arith.constant 0 : index
    %7 = vector.load %arg7[%c4, %c0_6] : memref<384x16xf32, #tpu.memory_space<vmem>>, vector<4x16xf32>
    tpu.vector_store %arg7[%c4, %c0_6], %6 {strides = array<i32>} : memref<384x16xf32, #tpu.memory_space<vmem>>, vector<4x16xf32>,
    %cst_7 = arith.constant 0.000000e+00 : f32
    %8 = vector.broadcast %cst_7 : f32 to vector<4x1xf32>
    %c8 = arith.constant 8 : index
    %c0_8 = arith.constant 0 : index
    %9 = vector.load %arg7[%c8, %c0_8] : memref<384x16xf32, #tpu.memory_space<vmem>>, vector<4x1xf32>
    tpu.vector_store %arg7[%c8, %c0_8], %8 {strides = array<i32>} : memref<384x16xf32, #tpu.memory_space<vmem>>, vector<4x1xf32>,
    %10 = vector.extract_strided_slice %1 {offsets = [0, 0], sizes = [4, 15], strides = [1, 1]} : vector<4x16xf32> to vector<4x15xf32>
    %c8_9 = arith.constant 8 : index
    %c1 = arith.constant 1 : index
    %11 = vector.load %arg7[%c8_9, %c1] : memref<384x16xf32, #tpu.memory_space<vmem>>, vector<4x15xf32>
    tpu.vector_store %arg7[%c8_9, %c1], %10 {strides = array<i32>} : memref<384x16xf32, #tpu.memory_space<vmem>>, vector<4x15xf32>,
    %cst_10 = arith.constant 0.000000e+00 : f32
    %12 = vector.broadcast %cst_10 : f32 to vector<4x16xf32>
    %c12 = arith.constant 12 : index
    %c0_11 = arith.constant 0 : index
    %13 = vector.load %arg7[%c12, %c0_11] : memref<384x16xf32, #tpu.memory_space<vmem>>, vector<4x16xf32>
    tpu.vector_store %arg7[%c12, %c0_11], %12 {strides = array<i32>} : memref<384x16xf32, #tpu.memory_space<vmem>>, vector<4x16xf32>,
    %c16 = arith.constant 16 : index
    %c0_12 = arith.constant 0 : index
    %14 = vector.load %arg7[%c16, %c0_12] : memref<384x16xf32, #tpu.memory_space<vmem>>, vector<4x16xf32>
    tpu.vector_store %arg7[%c16, %c0_12], %1 {strides = array<i32>} : memref<384x16xf32, #tpu.memory_space<vmem>>, vector<4x16xf32>,
    %cst_13 = arith.constant 0.000000e+00 : f32
    %15 = vector.broadcast %cst_13 : f32 to vector<4x16xf32>
    %c20 = arith.constant 20 : index
    %c0_14 = arith.constant 0 : index
    %16 = vector.load %arg7[%c20, %c0_14] : memref<384x16xf32, #tpu.memory_space<vmem>>, vector<4x16xf32>
    tpu.vector_store %arg7[%c20, %c0_14], %15 {strides = array<i32>} : memref<384x16xf32, #tpu.memory_space<vmem>>, vector<4x16xf32>,
    %cst_15 = arith.constant 0.000000e+00 : f32
    %17 = vector.broadcast %cst_15 : f32 to vector<4x1xf32>
    %c24 = arith.constant 24 : index
    %c15 = arith.constant 15 : index
    %18 = vector.load %arg7[%c24, %c15] : memref<384x16xf32, #tpu.memory_space<vmem>>, vector<4x1xf32>
    tpu.vector_store %arg7[%c24, %c15], %17 {strides = array<i32>} : memref<384x16xf32, #tpu.memory_space<vmem>>, vector<4x1xf32>,
    %19 = vector.extract_strided_slice %1 {offsets = [0, 1], sizes = [4, 15], strides = [1, 1]} : vector<4x16xf32> to vector<4x15xf32>
    %c24_16 = arith.constant 24 : index
    %c0_17 = arith.constant 0 : index
    %20 = vector.load %arg7[%c24_16, %c0_17] : memref<384x16xf32, #tpu.memory_space<vmem>>, vector<4x15xf32>
    tpu.vector_store %arg7[%c24_16, %c0_17], %19 {strides = array<i32>} : memref<384x16xf32, #tpu.memory_space<vmem>>, vector<4x15xf32>,
    %cst_18 = arith.constant 0.000000e+00 : f32
    %21 = vector.broadcast %cst_18 : f32 to vector<4x16xf32>
    %c28 = arith.constant 28 : index
    %c0_19 = arith.constant 0 : index
    %22 = vector.load %arg7[%c28, %c0_19] : memref<384x16xf32, #tpu.memory_space<vmem>>, vector<4x16xf32>
    tpu.vector_store %arg7[%c28, %c0_19], %21 {strides = array<i32>} : memref<384x16xf32, #tpu.memory_space<vmem>>, vector<4x16xf32>,
    %cst_20 = arith.constant 0.000000e+00 : f32
    %23 = vector.broadcast %cst_20 : f32 to vector<4x2xf32>
    %c32 = arith.constant 32 : index
    %c14 = arith.constant 14 : index
    %24 = vector.load %arg7[%c32, %c14] : memref<384x16xf32, #tpu.memory_space<vmem>>, vector<4x2xf32>
    tpu.vector_store %arg7[%c32, %c14], %23 {strides = array<i32>} : memref<384x16xf32, #tpu.memory_space<vmem>>, vector<4x2xf32>,
    %25 = vector.extract_strided_slice %1 {offsets = [0, 2], sizes = [4, 14], strides = [1, 1]} : vector<4x16xf32> to vector<4x14xf32>
    %c32_21 = arith.constant 32 : index
    %c0_22 = arith.constant 0 : index
    %26 = vector.load %arg7[%c32_21, %c0_22] : memref<384x16xf32, #tpu.memory_space<vmem>>, vector<4x14xf32>
    tpu.vector_store %arg7[%c32_21, %c0_22], %25 {strides = array<i32>} : memref<384x16xf32, #tpu.memory_space<vmem>>, vector<4x14xf32>,
    %cst_23 = arith.constant 0.000000e+00 : f32
    %27 = vector.broadcast %cst_23 : f32 to vector<4x16xf32>
    %c36 = arith.constant 36 : index
    %c0_24 = arith.constant 0 : index
    %28 = vector.load %arg7[%c36, %c0_24] : memref<384x16xf32, #tpu.memory_space<vmem>>, vector<4x16xf32>
    tpu.vector_store %arg7[%c36, %c0_24], %27 {strides = array<i32>} : memref<384x16xf32, #tpu.memory_space<vmem>>, vector<4x16xf32>,
    %cst_25 = arith.constant 1.000000e+00 : f32
    %29 = vector.broadcast %cst_25 : f32 to vector<8x16xf32>
    %c40 = arith.constant 40 : index
    %c0_26 = arith.constant 0 : index
    %30 = vector.load %arg7[%c40, %c0_26] : memref<384x16xf32, #tpu.memory_space<vmem>>, vector<8x16xf32>
    tpu.vector_store %arg7[%c40, %c0_26], %29 {strides = array<i32>} : memref<384x16xf32, #tpu.memory_space<vmem>>, vector<8x16xf32>,
    %c0_27 = arith.constant 0 : index
    %c0_28 = arith.constant 0 : index
    %31 = vector.load %arg2[%c0_27, %c0_28] : memref<96x48xf32, #tpu.memory_space<vmem>>, vector<96x48xf32>
    %c0_29 = arith.constant 0 : index
    %c0_30 = arith.constant 0 : index
    %32 = vector.load %arg7[%c0_29, %c0_30] : memref<384x16xf32, #tpu.memory_space<vmem>>, vector<48x16xf32>
    %cst_31 = arith.constant dense<0.000000e+00> : vector<96x16xf32>
    %33 = tpu.matmul %31, %32, %cst_31 {dimension_numbers = #tpu.dot_dimension_numbers<[1], [0], [0], [1], [0, 0, 1, 1], [], []>} : vector<96x48xf32>, vector<48x16xf32>, vector<96x16xf32> -> vector<96x16xf32>
    %cst_32 = arith.constant 0.000000e+00 : f32
    %34 = vector.broadcast %cst_32 : f32 to vector<96x16xf32>
    %35 = arith.maximumf %33, %34 : vector<96x16xf32>
    %36 = vector.extract_strided_slice %35 {offsets = [0, 0], sizes = [32, 16], strides = [1, 1]} : vector<96x16xf32> to vector<32x16xf32>
    %37 = vector.extract_strided_slice %35 {offsets = [32, 0], sizes = [32, 16], strides = [1, 1]} : vector<96x16xf32> to vector<32x16xf32>
    %38 = arith.addf %36, %37 : vector<32x16xf32>
    %39 = vector.extract_strided_slice %35 {offsets = [64, 0], sizes = [32, 16], strides = [1, 1]} : vector<96x16xf32> to vector<32x16xf32>
    %40 = arith.addf %38, %39 : vector<32x16xf32>
    %cst_33 = arith.constant 0.000000e+00 : f32
    %41 = vector.broadcast %cst_33 : f32 to vector<32x2xf32>
    %c48 = arith.constant 48 : index
    %c0_34 = arith.constant 0 : index
    %42 = vector.load %arg7[%c48, %c0_34] : memref<384x16xf32, #tpu.memory_space<vmem>>, vector<32x2xf32>
    tpu.vector_store %arg7[%c48, %c0_34], %41 {strides = array<i32>} : memref<384x16xf32, #tpu.memory_space<vmem>>, vector<32x2xf32>,
    %43 = vector.extract_strided_slice %40 {offsets = [0, 0], sizes = [32, 14], strides = [1, 1]} : vector<32x16xf32> to vector<32x14xf32>
    %c48_35 = arith.constant 48 : index
    %c2_36 = arith.constant 2 : index
    %44 = vector.load %arg7[%c48_35, %c2_36] : memref<384x16xf32, #tpu.memory_space<vmem>>, vector<32x14xf32>
    tpu.vector_store %arg7[%c48_35, %c2_36], %43 {strides = array<i32>} : memref<384x16xf32, #tpu.memory_space<vmem>>, vector<32x14xf32>,
    %cst_37 = arith.constant 0.000000e+00 : f32
    %45 = vector.broadcast %cst_37 : f32 to vector<32x1xf32>
    %c80 = arith.constant 80 : index
    %c0_38 = arith.constant 0 : index
    %46 = vector.load %arg7[%c80, %c0_38] : memref<384x16xf32, #tpu.memory_space<vmem>>, vector<32x1xf32>
    tpu.vector_store %arg7[%c80, %c0_38], %45 {strides = array<i32>} : memref<384x16xf32, #tpu.memory_space<vmem>>, vector<32x1xf32>,
    %47 = vector.extract_strided_slice %40 {offsets = [0, 0], sizes = [32, 15], strides = [1, 1]} : vector<32x16xf32> to vector<32x15xf32>
    %c80_39 = arith.constant 80 : index
    %c1_40 = arith.constant 1 : index
    %48 = vector.load %arg7[%c80_39, %c1_40] : memref<384x16xf32, #tpu.memory_space<vmem>>, vector<32x15xf32>
    tpu.vector_store %arg7[%c80_39, %c1_40], %47 {strides = array<i32>} : memref<384x16xf32, #tpu.memory_space<vmem>>, vector<32x15xf32>,
    %c112 = arith.constant 112 : index
    %c0_41 = arith.constant 0 : index
    %49 = vector.load %arg7[%c112, %c0_41] : memref<384x16xf32, #tpu.memory_space<vmem>>, vector<32x16xf32>
    tpu.vector_store %arg7[%c112, %c0_41], %40 {strides = array<i32>} : memref<384x16xf32, #tpu.memory_space<vmem>>, vector<32x16xf32>,
    %cst_42 = arith.constant 0.000000e+00 : f32
    %50 = vector.broadcast %cst_42 : f32 to vector<32x1xf32>
    %c144 = arith.constant 144 : index
    %c15_43 = arith.constant 15 : index
    %51 = vector.load %arg7[%c144, %c15_43] : memref<384x16xf32, #tpu.memory_space<vmem>>, vector<32x1xf32>
    tpu.vector_store %arg7[%c144, %c15_43], %50 {strides = array<i32>} : memref<384x16xf32, #tpu.memory_space<vmem>>, vector<32x1xf32>,
    %52 = vector.extract_strided_slice %40 {offsets = [0, 1], sizes = [32, 15], strides = [1, 1]} : vector<32x16xf32> to vector<32x15xf32>
    %c144_44 = arith.constant 144 : index
    %c0_45 = arith.constant 0 : index
    %53 = vector.load %arg7[%c144_44, %c0_45] : memref<384x16xf32, #tpu.memory_space<vmem>>, vector<32x15xf32>
    tpu.vector_store %arg7[%c144_44, %c0_45], %52 {strides = array<i32>} : memref<384x16xf32, #tpu.memory_space<vmem>>, vector<32x15xf32>,
    %cst_46 = arith.constant 0.000000e+00 : f32
    %54 = vector.broadcast %cst_46 : f32 to vector<32x2xf32>
    %c176 = arith.constant 176 : index
    %c14_47 = arith.constant 14 : index
    %55 = vector.load %arg7[%c176, %c14_47] : memref<384x16xf32, #tpu.memory_space<vmem>>, vector<32x2xf32>
    tpu.vector_store %arg7[%c176, %c14_47], %54 {strides = array<i32>} : memref<384x16xf32, #tpu.memory_space<vmem>>, vector<32x2xf32>,
    %56 = vector.extract_strided_slice %40 {offsets = [0, 2], sizes = [32, 14], strides = [1, 1]} : vector<32x16xf32> to vector<32x14xf32>
    %c176_48 = arith.constant 176 : index
    %c0_49 = arith.constant 0 : index
    %57 = vector.load %arg7[%c176_48, %c0_49] : memref<384x16xf32, #tpu.memory_space<vmem>>, vector<32x14xf32>
    tpu.vector_store %arg7[%c176_48, %c0_49], %56 {strides = array<i32>} : memref<384x16xf32, #tpu.memory_space<vmem>>, vector<32x14xf32>,
    %cst_50 = arith.constant 1.000000e+00 : f32
    %58 = vector.broadcast %cst_50 : f32 to vector<8x16xf32>
    %c208 = arith.constant 208 : index
    %c0_51 = arith.constant 0 : index
    %59 = vector.load %arg7[%c208, %c0_51] : memref<384x16xf32, #tpu.memory_space<vmem>>, vector<8x16xf32>
    tpu.vector_store %arg7[%c208, %c0_51], %58 {strides = array<i32>} : memref<384x16xf32, #tpu.memory_space<vmem>>, vector<8x16xf32>,
    %c0_52 = arith.constant 0 : index
    %c0_53 = arith.constant 0 : index
    %60 = vector.load %arg3[%c0_52, %c0_53] : memref<192x216xf32, #tpu.memory_space<vmem>>, vector<192x216xf32>
    %c0_54 = arith.constant 0 : index
    %c0_55 = arith.constant 0 : index
    %61 = vector.load %arg7[%c0_54, %c0_55] : memref<384x16xf32, #tpu.memory_space<vmem>>, vector<216x16xf32>
    %cst_56 = arith.constant dense<0.000000e+00> : vector<192x16xf32>
    %62 = tpu.matmul %60, %61, %cst_56 {dimension_numbers = #tpu.dot_dimension_numbers<[1], [0], [0], [1], [0, 0, 1, 1], [], []>} : vector<192x216xf32>, vector<216x16xf32>, vector<192x16xf32> -> vector<192x16xf32>
    %cst_57 = arith.constant 0.000000e+00 : f32
    %63 = vector.broadcast %cst_57 : f32 to vector<192x16xf32>
    %64 = arith.maximumf %62, %63 : vector<192x16xf32>
    %65 = vector.extract_strided_slice %64 {offsets = [0, 0], sizes = [32, 16], strides = [1, 1]} : vector<192x16xf32> to vector<32x16xf32>
    %66 = vector.extract_strided_slice %64 {offsets = [32, 0], sizes = [32, 16], strides = [1, 1]} : vector<192x16xf32> to vector<32x16xf32>
    %67 = arith.addf %65, %66 : vector<32x16xf32>
    %68 = vector.extract_strided_slice %64 {offsets = [64, 0], sizes = [32, 16], strides = [1, 1]} : vector<192x16xf32> to vector<32x16xf32>
    %69 = arith.addf %67, %68 : vector<32x16xf32>
    %70 = vector.extract_strided_slice %64 {offsets = [96, 0], sizes = [32, 16], strides = [1, 1]} : vector<192x16xf32> to vector<32x16xf32>
    %71 = arith.addf %69, %70 : vector<32x16xf32>
    %72 = vector.extract_strided_slice %64 {offsets = [128, 0], sizes = [32, 16], strides = [1, 1]} : vector<192x16xf32> to vector<32x16xf32>
    %73 = arith.addf %71, %72 : vector<32x16xf32>
    %74 = vector.extract_strided_slice %64 {offsets = [160, 0], sizes = [32, 16], strides = [1, 1]} : vector<192x16xf32> to vector<32x16xf32>
    %75 = arith.addf %73, %74 : vector<32x16xf32>
    %cst_58 = arith.constant 0.000000e+00 : f32
    %76 = vector.broadcast %cst_58 : f32 to vector<32x2xf32>
    %c216 = arith.constant 216 : index
    %c0_59 = arith.constant 0 : index
    %77 = vector.load %arg7[%c216, %c0_59] : memref<384x16xf32, #tpu.memory_space<vmem>>, vector<32x2xf32>
    tpu.vector_store %arg7[%c216, %c0_59], %76 {strides = array<i32>} : memref<384x16xf32, #tpu.memory_space<vmem>>, vector<32x2xf32>,
    %78 = vector.extract_strided_slice %75 {offsets = [0, 0], sizes = [32, 14], strides = [1, 1]} : vector<32x16xf32> to vector<32x14xf32>
    %c216_60 = arith.constant 216 : index
    %c2_61 = arith.constant 2 : index
    %79 = vector.load %arg7[%c216_60, %c2_61] : memref<384x16xf32, #tpu.memory_space<vmem>>, vector<32x14xf32>
    tpu.vector_store %arg7[%c216_60, %c2_61], %78 {strides = array<i32>} : memref<384x16xf32, #tpu.memory_space<vmem>>, vector<32x14xf32>,
    %cst_62 = arith.constant 0.000000e+00 : f32
    %80 = vector.broadcast %cst_62 : f32 to vector<32x1xf32>
    %c248 = arith.constant 248 : index
    %c0_63 = arith.constant 0 : index
    %81 = vector.load %arg7[%c248, %c0_63] : memref<384x16xf32, #tpu.memory_space<vmem>>, vector<32x1xf32>
    tpu.vector_store %arg7[%c248, %c0_63], %80 {strides = array<i32>} : memref<384x16xf32, #tpu.memory_space<vmem>>, vector<32x1xf32>,
    %82 = vector.extract_strided_slice %75 {offsets = [0, 0], sizes = [32, 15], strides = [1, 1]} : vector<32x16xf32> to vector<32x15xf32>
    %c248_64 = arith.constant 248 : index
    %c1_65 = arith.constant 1 : index
    %83 = vector.load %arg7[%c248_64, %c1_65] : memref<384x16xf32, #tpu.memory_space<vmem>>, vector<32x15xf32>
    tpu.vector_store %arg7[%c248_64, %c1_65], %82 {strides = array<i32>} : memref<384x16xf32, #tpu.memory_space<vmem>>, vector<32x15xf32>,
    %c280 = arith.constant 280 : index
    %c0_66 = arith.constant 0 : index
    %84 = vector.load %arg7[%c280, %c0_66] : memref<384x16xf32, #tpu.memory_space<vmem>>, vector<32x16xf32>
    tpu.vector_store %arg7[%c280, %c0_66], %75 {strides = array<i32>} : memref<384x16xf32, #tpu.memory_space<vmem>>, vector<32x16xf32>,
    %cst_67 = arith.constant 0.000000e+00 : f32
    %85 = vector.broadcast %cst_67 : f32 to vector<32x1xf32>
    %c312 = arith.constant 312 : index
    %c15_68 = arith.constant 15 : index
    %86 = vector.load %arg7[%c312, %c15_68] : memref<384x16xf32, #tpu.memory_space<vmem>>, vector<32x1xf32>
    tpu.vector_store %arg7[%c312, %c15_68], %85 {strides = array<i32>} : memref<384x16xf32, #tpu.memory_space<vmem>>, vector<32x1xf32>,
    %87 = vector.extract_strided_slice %75 {offsets = [0, 1], sizes = [32, 15], strides = [1, 1]} : vector<32x16xf32> to vector<32x15xf32>
    %c312_69 = arith.constant 312 : index
    %c0_70 = arith.constant 0 : index
    %88 = vector.load %arg7[%c312_69, %c0_70] : memref<384x16xf32, #tpu.memory_space<vmem>>, vector<32x15xf32>
    tpu.vector_store %arg7[%c312_69, %c0_70], %87 {strides = array<i32>} : memref<384x16xf32, #tpu.memory_space<vmem>>, vector<32x15xf32>,
    %cst_71 = arith.constant 0.000000e+00 : f32
    %89 = vector.broadcast %cst_71 : f32 to vector<32x2xf32>
    %c344 = arith.constant 344 : index
    %c14_72 = arith.constant 14 : index
    %90 = vector.load %arg7[%c344, %c14_72] : memref<384x16xf32, #tpu.memory_space<vmem>>, vector<32x2xf32>
    tpu.vector_store %arg7[%c344, %c14_72], %89 {strides = array<i32>} : memref<384x16xf32, #tpu.memory_space<vmem>>, vector<32x2xf32>,
    %91 = vector.extract_strided_slice %75 {offsets = [0, 2], sizes = [32, 14], strides = [1, 1]} : vector<32x16xf32> to vector<32x14xf32>
    %c344_73 = arith.constant 344 : index
    %c0_74 = arith.constant 0 : index
    %92 = vector.load %arg7[%c344_73, %c0_74] : memref<384x16xf32, #tpu.memory_space<vmem>>, vector<32x14xf32>
    tpu.vector_store %arg7[%c344_73, %c0_74], %91 {strides = array<i32>} : memref<384x16xf32, #tpu.memory_space<vmem>>, vector<32x14xf32>,
    %cst_75 = arith.constant 1.000000e+00 : f32
    %93 = vector.broadcast %cst_75 : f32 to vector<8x16xf32>
    %c376 = arith.constant 376 : index
    %c0_76 = arith.constant 0 : index
    %94 = vector.load %arg7[%c376, %c0_76] : memref<384x16xf32, #tpu.memory_space<vmem>>, vector<8x16xf32>
    tpu.vector_store %arg7[%c376, %c0_76], %93 {strides = array<i32>} : memref<384x16xf32, #tpu.memory_space<vmem>>, vector<8x16xf32>,
    %c0_77 = arith.constant 0 : index
    %c0_78 = arith.constant 0 : index
    %95 = vector.load %arg4[%c0_77, %c0_78] : memref<9x384xf32, #tpu.memory_space<vmem>>, vector<9x384xf32>
    %c0_79 = arith.constant 0 : index
    %c0_80 = arith.constant 0 : index
    %96 = vector.load %arg7[%c0_79, %c0_80] : memref<384x16xf32, #tpu.memory_space<vmem>>, vector<384x16xf32>
    %cst_81 = arith.constant dense<0.000000e+00> : vector<9x16xf32>
    %97 = tpu.matmul %95, %96, %cst_81 {dimension_numbers = #tpu.dot_dimension_numbers<[1], [0], [0], [1], [0, 0, 1, 1], [], []>} : vector<9x384xf32>, vector<384x16xf32>, vector<9x16xf32> -> vector<9x16xf32>
    %98 = arith.negf %97 : vector<9x16xf32>
    %99 = math.exp %98 : vector<9x16xf32>
    %cst_82 = arith.constant 1.000000e+00 : f32
    %100 = vector.broadcast %cst_82 : f32 to vector<9x16xf32>
    %101 = arith.addf %100, %99 : vector<9x16xf32>
    %102 = arith.divf %100, %101 : vector<9x16xf32>
    %c0_83 = arith.constant 0 : index
    %c0_84 = arith.constant 0 : index
    %103 = vector.load %arg5[%c0_83, %c0_84] : memref<9x1xf32, #tpu.memory_space<vmem>>, vector<9x1xf32>
    %104 = vector.broadcast %103 : vector<9x1xf32> to vector<9x16xf32>
    %105 = arith.mulf %104, %102 : vector<9x16xf32>
    %106 = vector.extract_strided_slice %105 {offsets = [0, 0], sizes = [1, 16], strides = [1, 1]} : vector<9x16xf32> to vector<1x16xf32>
    %107 = vector.extract_strided_slice %105 {offsets = [1, 0], sizes = [1, 16], strides = [1, 1]} : vector<9x16xf32> to vector<1x16xf32>
    %108 = arith.addf %106, %107 : vector<1x16xf32>
    %109 = vector.extract_strided_slice %105 {offsets = [2, 0], sizes = [1, 16], strides = [1, 1]} : vector<9x16xf32> to vector<1x16xf32>
    %110 = arith.addf %108, %109 : vector<1x16xf32>
    %111 = vector.extract_strided_slice %105 {offsets = [3, 0], sizes = [1, 16], strides = [1, 1]} : vector<9x16xf32> to vector<1x16xf32>
    %112 = arith.addf %110, %111 : vector<1x16xf32>
    %113 = vector.extract_strided_slice %105 {offsets = [4, 0], sizes = [1, 16], strides = [1, 1]} : vector<9x16xf32> to vector<1x16xf32>
    %114 = arith.addf %112, %113 : vector<1x16xf32>
    %115 = vector.extract_strided_slice %105 {offsets = [5, 0], sizes = [1, 16], strides = [1, 1]} : vector<9x16xf32> to vector<1x16xf32>
    %116 = arith.addf %114, %115 : vector<1x16xf32>
    %117 = vector.extract_strided_slice %105 {offsets = [6, 0], sizes = [1, 16], strides = [1, 1]} : vector<9x16xf32> to vector<1x16xf32>
    %118 = arith.addf %116, %117 : vector<1x16xf32>
    %119 = vector.extract_strided_slice %105 {offsets = [7, 0], sizes = [1, 16], strides = [1, 1]} : vector<9x16xf32> to vector<1x16xf32>
    %120 = arith.addf %118, %119 : vector<1x16xf32>
    %121 = vector.extract_strided_slice %105 {offsets = [8, 0], sizes = [1, 16], strides = [1, 1]} : vector<9x16xf32> to vector<1x16xf32>
    %122 = arith.addf %120, %121 : vector<1x16xf32>
    %123 = vector.broadcast %122 : vector<1x16xf32> to vector<4x16xf32>
    %124 = arith.mulf %1, %123 : vector<4x16xf32>
    %c0_85 = arith.constant 0 : index
    %c0_86 = arith.constant 0 : index
    %c0_87 = arith.constant 0 : index
    %125 = vector.load %arg6[%c0_85, %c0_86, %c0_87] : memref<1x4x16xf32, #tpu.memory_space<vmem>>, vector<1x4x16xf32>
    %126 = vector.shape_cast %125 : vector<1x4x16xf32> to vector<4x16xf32>
    %127 = vector.shape_cast %124 : vector<4x16xf32> to vector<1x4x16xf32>
    tpu.vector_store %arg6[%c0_85, %c0_86, %c0_87], %127 {strides = array<i32>} : memref<1x4x16xf32, #tpu.memory_space<vmem>>, vector<1x4x16xf32>,
    return
  }
  func.func @transform_0(%arg0: i32) -> (i32, i32, i32) {
    %c0_i32 = arith.constant 0 : i32
    %c0_i32_0 = arith.constant 0 : i32
    %c0_i32_1 = arith.constant 0 : i32
    return %arg0, %c0_i32, %c0_i32_0 : i32, i32, i32
  }
  func.func @transform_1(%arg0: i32) -> (i32, i32) {
    %c0_i32 = arith.constant 0 : i32
    %c0_i32_0 = arith.constant 0 : i32
    %c0_i32_1 = arith.constant 0 : i32
    return %c0_i32, %c0_i32_0 : i32, i32
  }
  func.func @transform_2(%arg0: i32) -> (i32, i32) {
    %c0_i32 = arith.constant 0 : i32
    %c0_i32_0 = arith.constant 0 : i32
    %c0_i32_1 = arith.constant 0 : i32
    return %c0_i32, %c0_i32_0 : i32, i32
  }
  func.func @transform_3(%arg0: i32) -> (i32, i32) {
    %c0_i32 = arith.constant 0 : i32
    %c0_i32_0 = arith.constant 0 : i32
    %c0_i32_1 = arith.constant 0 : i32
    return %c0_i32, %c0_i32_0 : i32, i32
  }
  func.func @transform_4(%arg0: i32) -> (i32, i32) {
    %c0_i32 = arith.constant 0 : i32
    %c0_i32_0 = arith.constant 0 : i32
    %c0_i32_1 = arith.constant 0 : i32
    return %c0_i32, %c0_i32_0 : i32, i32
  }
  func.func @transform_5(%arg0: i32) -> (i32, i32, i32) {
    %c0_i32 = arith.constant 0 : i32
    %c0_i32_0 = arith.constant 0 : i32
    %c0_i32_1 = arith.constant 0 : i32
    return %arg0, %c0_i32, %c0_i32_0 : i32, i32, i32
  }
}

</mosaic_0001>

<llo_original>
// kernel: _lambda_.1
$region0: #{_lambda_.1}
  #allocation0 [shape = 'u32[]', space=smem, size = 0x4, offset = 0x4, fixed_abs, tag = 'smem constant byte address 0x4 - core index']
  #allocation1 [shape = 'u32[144,128]{1,0:T(1,128)}', space=vmem, size = 0x12000, scoped, tag = 'internal scratch']
  #allocation2 [shape = 'f32[384,16]{1,0:T(8,128)}', space=vmem, size = 0x30000, scoped, tag = 'scratch operand']
  %s0 = inlined_call_operand.vmem [shape: f32[2,4,16], index: 0, kind: input, shape index: {}]
  %s1 = inlined_call_operand.vmem [shape: f32[96,48], index: 1, kind: input, shape index: {}]
  %s2 = inlined_call_operand.hbm [shape: f32[192,216], index: 2, kind: input, shape index: {}]
  %s3 = inlined_call_operand.vmem [shape: f32[9,384], index: 3, kind: input, shape index: {}]
  %s4 = inlined_call_operand.vmem [shape: f32[9,1], index: 4, kind: input, shape index: {}]
  %s5 = inlined_call_operand.hbm [shape: f32[2,4,16], index: 5, kind: output, shape index: {}]
  %s6 = sld [smem:[#allocation0]]
  $region57: #{_lambda_.1} parent=0
    _
  %s8 = ssub.s32 1, %s6
  %s9 = scalar_select 0, %s8, %s6
  $region1: #{_lambda_.1} parent=0
    #allocation3 [shape = 'u8[196608]{0}', space=vmem, size = 0x30000, scoped, tag = 'input window, operand 2, single buffered']
    #allocation4 [shape = 's32[2]{0}', space=sflag, size = 0x8, scoped, tag = 'scoped memory for _lambda_.1']
    #allocation5 [shape = 's32[2]{0}', space=sflag, size = 0x8, scoped, tag = 'scoped memory for _lambda_.1']
    #allocation6 [shape = 'u8[4096]{0}', space=vmem, size = 0x1000, scoped, tag = 'output window, operand 0']
    %10 = vsyncpa [#allocation4], 0
    %11 = vsyncpa [#allocation5], 0
    %s12 = scalar_lea.sflag [#allocation5], 1
    %13 = vsyncpa %s12, 0
    loop: start=0, step=1, limit=4
    $region2: #{_lambda_.1} parent=1 // loop_pre_header
      _
    $region3: #{_lambda_.1} parent=1 // loop_header
      %s15 = sphi 0, %s19
      %p16 = scmp.ge.s32.totalorder %s15, 4
      %s25 = sphi 0, %s27
      %s28 = sphi 0, %s25
      %s29 = sphi 0, %s28
      %s45 = sphi 0, %s29
      %s49 = sphi 0, %s49
      %s51 = sphi 0, %s49
      %s52 = sphi 0, %s51
      %s66 = sphi 0, %s52
      %s70 = sphi 0, %s70
      %s72 = sphi 0, %s70
      %s73 = sphi 0, %s72
      %s87 = sphi 0, %s73
      %s91 = sphi 0, %s91
      %s93 = sphi 0, %s91
      %s94 = sphi 0, %s93
      %s108 = sphi 0, %s94
      %s112 = sphi 0, %s112
      %s114 = sphi 0, %s112
      %s115 = sphi 0, %s114
      %s129 = sphi 0, %s115
      %s135 = sphi 0, %s137
      %s138 = sphi 0, %s135
      %s139 = sphi 0, %s138
      %s155 = sphi 0, %s139
    $region4: #{_lambda_.1} parent=1 // loop_header_branch
      %18 = sbr.rel (%p16) target = $region8
    $region5: #{_lambda_.1} parent=1 // loop_body
      %s20 = ssub.s32 %s15, 1
      %s21 = ssub.s32 %s15, 2
      %s22 = sadd.s32 %s15, 1
      %s23 = ssub.s32 %s15, %s22
      %p24 = scmp.eq.s32.totalorder %s23, 0
      %s26 = sadd.s32 %s25, 1
      %s27 = scalar_select %p24, %s25, %s26
      %p30 = pneg %p24
      %p31 = scmp.eq.s32.totalorder %s15, 1
      %p32 = por %p30, %p31
      %p33 = scmp.ne.s32.totalorder %s25, %s28
      %p34 = scmp.eq.s32.totalorder %s15, 0
      %p35 = por %p33, %p34
      %p36 = scmp.ne.s32.totalorder %s25, %s28
      %p37 = scmp.eq.s32.totalorder %s20, 1
      %p38 = por %p36, %p37
      %p39 = scmp.ne.s32.totalorder %s28, %s29
      %p40 = scmp.eq.s32.totalorder %s20, 0
      %p41 = por %p39, %p40
      %p42 = scmp.ne.s32.totalorder %s28, %s29
      %p43 = scmp.eq.s32.totalorder %s21, 1
      %p44 = por %p42, %p43
      %p46 = scmp.ne.s32.totalorder %s29, %s45
      %p47 = scmp.eq.s32.totalorder %s21, 0
      %p48 = por %p46, %p47
      %s50 = sadd.s32 %s49, 1
      %p53 = scmp.eq.s32.totalorder %s15, 1
      %p54 = scmp.ne.s32.totalorder %s49, %s51
      %p55 = scmp.eq.s32.totalorder %s15, 0
      %p56 = por %p54, %p55
      %p57 = scmp.ne.s32.totalorder %s49, %s51
      %p58 = scmp.eq.s32.totalorder %s20, 1
      %p59 = por %p57, %p58
      %p60 = scmp.ne.s32.totalorder %s51, %s52
      %p61 = scmp.eq.s32.totalorder %s20, 0
      %p62 = por %p60, %p61
      %p63 = scmp.ne.s32.totalorder %s51, %s52
      %p64 = scmp.eq.s32.totalorder %s21, 1
      %p65 = por %p63, %p64
      %p67 = scmp.ne.s32.totalorder %s52, %s66
      %p68 = scmp.eq.s32.totalorder %s21, 0
      %p69 = por %p67, %p68
      %s71 = sadd.s32 %s70, 1
      %p74 = scmp.eq.s32.totalorder %s15, 1
      %p75 = scmp.ne.s32.totalorder %s70, %s72
      %p76 = scmp.eq.s32.totalorder %s15, 0
      %p77 = por %p75, %p76
      %p78 = scmp.ne.s32.totalorder %s70, %s72
      %p79 = scmp.eq.s32.totalorder %s20, 1
      %p80 = por %p78, %p79
      %p81 = scmp.ne.s32.totalorder %s72, %s73
      %p82 = scmp.eq.s32.totalorder %s20, 0
      %p83 = por %p81, %p82
      %p84 = scmp.ne.s32.totalorder %s72, %s73
      %p85 = scmp.eq.s32.totalorder %s21, 1
      %p86 = por %p84, %p85
      %p88 = scmp.ne.s32.totalorder %s73, %s87
      %p89 = scmp.eq.s32.totalorder %s21, 0
      %p90 = por %p88, %p89
      %s92 = sadd.s32 %s91, 1
      %p95 = scmp.eq.s32.totalorder %s15, 1
      %p96 = scmp.ne.s32.totalorder %s91, %s93
      %p97 = scmp.eq.s32.totalorder %s15, 0
      %p98 = por %p96, %p97
      %p99 = scmp.ne.s32.totalorder %s91, %s93
      %p100 = scmp.eq.s32.totalorder %s20, 1
      %p101 = por %p99, %p100
      %p102 = scmp.ne.s32.totalorder %s93, %s94
      %p103 = scmp.eq.s32.totalorder %s20, 0
      %p104 = por %p102, %p103
      %p105 = scmp.ne.s32.totalorder %s93, %s94
      %p106 = scmp.eq.s32.totalorder %s21, 1
      %p107 = por %p105, %p106
      %p109 = scmp.ne.s32.totalorder %s94, %s108
      %p110 = scmp.eq.s32.totalorder %s21, 0
      %p111 = por %p109, %p110
      %s113 = sadd.s32 %s112, 1
      %p116 = scmp.eq.s32.totalorder %s15, 1
      %p117 = scmp.ne.s32.totalorder %s112, %s114
      %p118 = scmp.eq.s32.totalorder %s15, 0
      %p119 = por %p117, %p118
      %p120 = scmp.ne.s32.totalorder %s112, %s114
      %p121 = scmp.eq.s32.totalorder %s20, 1
      %p122 = por %p120, %p121
      %p123 = scmp.ne.s32.totalorder %s114, %s115
      %p124 = scmp.eq.s32.totalorder %s20, 0
      %p125 = por %p123, %p124
      %p126 = scmp.ne.s32.totalorder %s114, %s115
      %p127 = scmp.eq.s32.totalorder %s21, 1
      %p128 = por %p126, %p127
      %p130 = scmp.ne.s32.totalorder %s115, %s129
      %p131 = scmp.eq.s32.totalorder %s21, 0
      %p132 = por %p130, %p131
      %s133 = ssub.s32 %s15, %s22
      %p134 = scmp.eq.s32.totalorder %s133, 0
      %s136 = sadd.s32 %s135, 1
      %s137 = scalar_select %p134, %s135, %s136
      %p140 = pneg %p134
      %p141 = scmp.eq.s32.totalorder %s15, 1
      %p142 = por %p140, %p141
      %p143 = scmp.ne.s32.totalorder %s135, %s138
      %p144 = scmp.eq.s32.totalorder %s15, 0
      %p145 = por %p143, %p144
      %p146 = scmp.ne.s32.totalorder %s135, %s138
      %p147 = scmp.eq.s32.totalorder %s20, 1
      %p148 = por %p146, %p147
      %p149 = scmp.ne.s32.totalorder %s138, %s139
      %p150 = scmp.eq.s32.totalorder %s20, 0
      %p151 = por %p149, %p150
      %p152 = scmp.ne.s32.totalorder %s138, %s139
      %p153 = scmp.eq.s32.totalorder %s21, 1
      %p154 = por %p152, %p153
      %p156 = scmp.ne.s32.totalorder %s139, %s155
      %p157 = scmp.eq.s32.totalorder %s21, 0
      %p158 = por %p156, %p157
      %p159 = scmp.le.s32.totalorder 1, %s15
      %p160 = scmp.lt.s32.totalorder %s15, 3
      %p161 = pnand %p159, %p160
      %p162 = pneg %p161
      // Predicated region
      $region9: #{_lambda_.1} parent=5 // pred_check
        _
      $region10: #{_lambda_.1} parent=5 // pred_check_branch
        %164 = sbr.rel (%p161) target = $region12
      $region11: #{_lambda_.1} parent=5 // pred_region
        %s165 = ssub.s32 %s15, 1
        // Predicated region
        $region13: #{_lambda_.1} parent=11 // pred_check
          %p166 = pneg %p62
        $region14: #{_lambda_.1} parent=11 // pred_check_branch
          %168 = sbr.rel (%p166) target = $region16
        $region15: #{_lambda_.1} parent=11 // pred_region
          _
        $region16: #{_lambda_.1} parent=11 // pred_fallthru
          _
        // Predicated region
        $region17: #{_lambda_.1} parent=11 // pred_check
          %p169 = pneg %p83
        $region18: #{_lambda_.1} parent=11 // pred_check_branch
          %171 = sbr.rel (%p169) target = $region20
        $region19: #{_lambda_.1} parent=11 // pred_region
          %s173 = ssub.s32 6144, 6144
          %174 = vsyncadd [#allocation4], %s173
          %s175 = sshll.u32 [#allocation3], 4
          %s176 = int_to_ptr.vmem [resolvable:$true] %s175
          %181 = dma.hbm_to_vmem [thread:$0]  %s2, 6144, %s176, [#allocation4], 256, 256, 16
        $region20: #{_lambda_.1} parent=11 // pred_fallthru
          _
        // Predicated region
        $region21: #{_lambda_.1} parent=11 // pred_check
          %p182 = pneg %p104
        $region22: #{_lambda_.1} parent=11 // pred_check_branch
          %184 = sbr.rel (%p182) target = $region24
        $region23: #{_lambda_.1} parent=11 // pred_region
          _
        $region24: #{_lambda_.1} parent=11 // pred_fallthru
          _
        // Predicated region
        $region25: #{_lambda_.1} parent=11 // pred_check
          %p185 = pneg %p125
        $region26: #{_lambda_.1} parent=11 // pred_check_branch
          %187 = sbr.rel (%p185) target = $region28
        $region27: #{_lambda_.1} parent=11 // pred_region
          _
        $region28: #{_lambda_.1} parent=11 // pred_fallthru
          _
      $region12: #{_lambda_.1} parent=5 // pred_fallthru
        _
      %p188 = scmp.lt.s32.totalorder %s15, 2
      // Predicated region
      $region29: #{_lambda_.1} parent=5 // pred_check
        %p189 = pneg %p188
      $region30: #{_lambda_.1} parent=5 // pred_check_branch
        %191 = sbr.rel (%p189) target = $region32
      $region31: #{_lambda_.1} parent=5 // pred_region
        // Predicated region
        $region33: #{_lambda_.1} parent=31 // pred_check
          %p192 = pneg %p35
        $region34: #{_lambda_.1} parent=31 // pred_check_branch
          %194 = sbr.rel (%p192) target = $region36
        $region35: #{_lambda_.1} parent=31 // pred_region
          %p195 = scmp.lt.s32.totalorder %s15, 1
          %s196 = scalar_select %p195, %s15, 1
          %s197 = smul.addr %s196, 4
          %s198 = scalar_lea.vmem %s0, %s197
        $region36: #{_lambda_.1} parent=31 // pred_fallthru
          _
      $region32: #{_lambda_.1} parent=5 // pred_fallthru
        _
      %p199 = scmp.le.s32.totalorder 1, %s15
      %p200 = scmp.lt.s32.totalorder %s15, 3
      %p201 = pnand %p199, %p200
      %p202 = pneg %p201
      // Predicated region
      $region37: #{_lambda_.1} parent=5 // pred_check
        _
      $region38: #{_lambda_.1} parent=5 // pred_check_branch
        %204 = sbr.rel (%p201) target = $region40
      $region39: #{_lambda_.1} parent=5 // pred_region
        %s205 = ssub.s32 %s15, 1
        // Predicated region
        $region41: #{_lambda_.1} parent=39 // pred_check
          %p206 = pneg %p83
        $region42: #{_lambda_.1} parent=39 // pred_check_branch
          %208 = sbr.rel (%p206) target = $region44
        $region43: #{_lambda_.1} parent=39 // pred_region
          %209 = dma.done [#allocation4], 6144
        $region44: #{_lambda_.1} parent=39 // pred_fallthru
          _
        %p210 = scmp.lt.s32.totalorder %s20, 1
        %s211 = scalar_select %p210, %s20, 1
        %s212 = smul.addr %s211, 4
        %s213 = scalar_lea.vmem %s0, %s212
        %p214 = pneg %p41
        %p215 = pneg %p38
        %p216 = pneg %p62
        %p217 = pneg %p59
        %p218 = pneg %p83
        %p219 = pneg %p80
        %p220 = pneg %p104
        %p221 = pneg %p101
        %p222 = pneg %p125
        %p223 = pneg %p122
        %p224 = pneg %p151
        %p225 = pneg %p148
        %s226 = sand.u32 %s138, 1
        %s227 = scalar_lea.sflag [#allocation5], %s226
        %s228 = sand.u32 %s138, 1
        %s229 = smul.addr %s228, 4
        %s230 = scalar_lea.vmem [#allocation6], %s229
        %p231 = scmp.lt.s32.totalorder %s20, 1
        %s232 = scalar_select %p231, %s20, 1
        %s233 = smul.addr %s232, 4
        %s234 = scalar_lea.vmem %s0, %s233
        %v235 = vld [vmem:[%s234] sm:$0xf]
        %vm236 = vcmask 11264
        %237 = vst.msk [vmem:[#allocation2] sm:$0xf] %vm236, 0.0
        %239 = vrot.lane.b32.xlu0 %v235, 2
        %v240 = vpop.permute.xlu0 %239
        %vm242 = vcmask 125968
        %243 = vst.msk [vmem:[#allocation2] sm:$0xf] %vm242, %v240
        %vm244 = vcmask 125952
        %245 = vst.msk [vmem:[#allocation2 + $0x4] sm:$0xf] %vm244, 0.0
        %vm246 = vcmask 3072
        %247 = vst.msk [vmem:[#allocation2 + $0x8] sm:$0xf] %vm246, 0.0
        %248 = vrot.lane.b32.xlu0 %v235, 1
        %v249 = vpop.permute.xlu0 %248
        %vm251 = vcmask 125960
        %252 = vst.msk [vmem:[#allocation2 + $0x8] sm:$0xf] %vm251, %v249
        %253 = vst.msk [vmem:[#allocation2 + $0xc] sm:$0xf] %vm244, 0.0
        %254 = vst.msk [vmem:[#allocation2 + $0x10] sm:$0xf] %vm244, %v235
        %255 = vst.msk [vmem:[#allocation2 + $0x14] sm:$0xf] %vm244, 0.0
        %vm256 = vcmask 126072
        %257 = vst.msk [vmem:[#allocation2 + $0x18] sm:$0xf] %vm256, 0.0
        %258 = vrot.lane.b32.xlu0 %v235, 127
        %v259 = vpop.permute.xlu0 %258
        %vm261 = vcmask 117760
        %262 = vst.msk [vmem:[#allocation2 + $0x18] sm:$0xf] %vm261, %v259
        %263 = vst.msk [vmem:[#allocation2 + $0x1c] sm:$0xf] %vm244, 0.0
        %vm264 = vcmask 126064
        %265 = vst.msk [vmem:[#allocation2 + $0x20] sm:$0xf] %vm264, 0.0
        %266 = vrot.lane.b32.xlu0 %v235, 126
        %v267 = vpop.permute.xlu0 %266
        %vm269 = vcmask 109568
        %270 = vst.msk [vmem:[#allocation2 + $0x20] sm:$0xf] %vm269, %v267
        %271 = vst.msk [vmem:[#allocation2 + $0x24] sm:$0xf] %vm244, 0.0
        %vm272 = vcmask 130048
        %273 = vst.msk [vmem:[#allocation2 + $0x28] sm:$0xff] %vm272, 1.0
        %v274 = vld [vmem:[%s1] sm:$0xff]
        %v275 = vld [vmem:[%s1 + $0x8] sm:$0xff]
        %v276 = vld [vmem:[%s1 + $0x10] sm:$0xff]
        %v277 = vld [vmem:[%s1 + $0x18] sm:$0xff]
        %v278 = vld [vmem:[%s1 + $0x20] sm:$0xff]
        %v279 = vld [vmem:[%s1 + $0x28] sm:$0xff]
        %v280 = vld [vmem:[%s1 + $0x30] sm:$0xff]
        %v281 = vld [vmem:[%s1 + $0x38] sm:$0xff]
        %v282 = vld [vmem:[%s1 + $0x40] sm:$0xff]
        %v283 = vld [vmem:[%s1 + $0x48] sm:$0xff]
        %v284 = vld [vmem:[%s1 + $0x50] sm:$0xff]
        %v285 = vld [vmem:[%s1 + $0x58] sm:$0xff]
        %v286 = vld [vmem:[#allocation2] sm:$0xff]
        %v287 = vld [vmem:[#allocation2 + $0x8] sm:$0xff]
        %v288 = vld [vmem:[#allocation2 + $0x10] sm:$0xff]
        %v289 = vld [vmem:[#allocation2 + $0x18] sm:$0xff]
        %v290 = vld [vmem:[#allocation2 + $0x20] sm:$0xff]
        %v291 = vld [vmem:[#allocation2 + $0x28] sm:$0xff]
        %vm292 = vcmask 392192
        %v294 = vsel %vm292, %v274, 0
        %v297 = vsel %vm292, %v275, 0
        %v300 = vsel %vm292, %v276, 0
        %v303 = vsel %vm292, %v277, 0
        %v306 = vsel %vm292, %v278, 0
        %v309 = vsel %vm292, %v279, 0
        %v312 = vsel %vm292, %v280, 0
        %v315 = vsel %vm292, %v281, 0
        %v318 = vsel %vm292, %v282, 0
        %v321 = vsel %vm292, %v283, 0
        %v324 = vsel %vm292, %v284, 0
        %v327 = vsel %vm292, %v285, 0
        %329 = vmatprep.subr.mxu0 0.0
        %330 = vmatpush1.msra.mxu0 %v286
        %331 = vmatprep.subr.mxu0 0.0
        %332 = vmatpush1.msra.mxu0 %v287
        %333 = vmatprep.subr.mxu0 0.0
        %334 = vmatpush1.msra.mxu0 %v288
        %335 = vmatprep.subr.mxu0 0.0
        %336 = vmatpush1.msra.mxu0 %v289
        %337 = vmatprep.subr.mxu0 0.0
        %338 = vmatpush1.msra.mxu0 %v290
        %339 = vmatprep.subr.mxu0 0.0
        %340 = vmatpush1.msra.mxu0 %v291
        %341 = vmatprep.subr.mxu0 0.0
        %342 = vmatpush1.msra.mxu0 0.0
        %343 = vmatprep.subr.mxu0 0.0
        %344 = vmatpush1.msra.mxu0 0.0
        %345 = vmatprep.subr.mxu0 0.0
        %346 = vmatpush1.msra.mxu0 0.0
        %347 = vmatprep.subr.mxu0 0.0
        %348 = vmatpush1.msra.mxu0 0.0
        %349 = vmatprep.subr.mxu0 0.0
        %350 = vmatpush1.msra.mxu0 0.0
        %351 = vmatprep.subr.mxu0 0.0
        %352 = vmatpush1.msra.mxu0 0.0
        %353 = vmatprep.subr.mxu0 0.0
        %354 = vmatpush1.msra.mxu0 0.0
        %355 = vmatprep.subr.mxu0 0.0
        %356 = vmatpush1.msra.mxu0 0.0
        %357 = vmatprep.subr.mxu0 0.0
        %358 = vmatpush1.msra.mxu0 0.0
        %359 = vmatprep.subr.mxu0 0.0
        %360 = vmatpush1.msra.mxu0 0.0
        %361 = vmatprep.subr.mxu0 0.0
        %362 = vmatpush1.msra.mxu0 0.0
        %363 = vmatprep.subr.mxu0 0.0
        %364 = vmatpush1.msra.mxu0 0.0
        %365 = vmatprep.subr.mxu0 0.0
        %366 = vmatpush1.msra.mxu0 0.0
        %367 = vmatprep.subr.mxu0 0.0
        %368 = vmatpush1.msra.mxu0 0.0
        %369 = vmatprep.subr.mxu0 0.0
        %370 = vmatpush1.msra.mxu0 0.0
        %371 = vmatprep.subr.mxu0 0.0
        %372 = vmatpush1.msra.mxu0 0.0
        %373 = vmatprep.subr.mxu0 0.0
        %374 = vmatpush1.msra.mxu0 0.0
        %375 = vmatprep.subr.mxu0 0.0
        %376 = vmatpush1.msra.mxu0 0.0
        %377 = vmatprep.subr.mxu0 0.0
        %378 = vmatpush1.msra.mxu0 0.0
        %379 = vmatprep.subr.mxu0 0.0
        %380 = vmatpush1.msra.mxu0 0.0
        %381 = vmatprep.subr.mxu0 0.0
        %382 = vmatpush1.msra.mxu0 0.0
        %383 = vmatprep.subr.mxu0 0.0
        %384 = vmatpush1.msra.mxu0 0.0
        %385 = vmatprep.subr.mxu0 0.0
        %386 = vmatpush1.msra.mxu0 0.0
        %387 = vmatprep.subr.mxu0 0.0
        %388 = vmatpush1.msra.mxu0 0.0
        %389 = vmatprep.subr.mxu0 0.0
        %390 = vmatpush1.msra.mxu0 0.0
        %391 = vmatprep.subr.mxu0 0.0
        %392 = vmatpush1.msra.mxu0 0.0
        %393 = vmatprep.mubr.f32.mxu0 0.0
        %394 = vmatmul.mubr.f32.gmra.mrb[0].mxu0 %v294
        %v395 = vpop.f32.mrb[0].mxu0
        %v396 = vadd.f32 0.0, %v395
        %v397 = vpop.f32.mrb[0].mxu0
        %398 = vmatprep.mubr.f32.mxu0 0.0
        %399 = vmatmul.mubr.f32.gmra.mrb[0].mxu0 %v297
        %v400 = vpop.f32.mrb[0].mxu0
        %v401 = vadd.f32 0.0, %v400
        %v402 = vpop.f32.mrb[0].mxu0
        %403 = vmatprep.mubr.f32.mxu0 0.0
        %404 = vmatmul.mubr.f32.gmra.mrb[0].mxu0 %v300
        %v405 = vpop.f32.mrb[0].mxu0
        %v406 = vadd.f32 0.0, %v405
        %v407 = vpop.f32.mrb[0].mxu0
        %408 = vmatprep.mubr.f32.mxu0 0.0
        %409 = vmatmul.mubr.f32.gmra.mrb[0].mxu0 %v303
        %v410 = vpop.f32.mrb[0].mxu0
        %v411 = vadd.f32 0.0, %v410
        %v412 = vpop.f32.mrb[0].mxu0
        %413 = vmatprep.mubr.f32.mxu0 0.0
        %414 = vmatmul.mubr.f32.gmra.mrb[0].mxu0 %v306
        %v415 = vpop.f32.mrb[0].mxu0
        %v416 = vadd.f32 0.0, %v415
        %v417 = vpop.f32.mrb[0].mxu0
        %418 = vmatprep.mubr.f32.mxu0 0.0
        %419 = vmatmul.mubr.f32.gmra.mrb[0].mxu0 %v309
        %v420 = vpop.f32.mrb[0].mxu0
        %v421 = vadd.f32 0.0, %v420
        %v422 = vpop.f32.mrb[0].mxu0
        %423 = vmatprep.mubr.f32.mxu0 0.0
        %424 = vmatmul.mubr.f32.gmra.mrb[0].mxu0 %v312
        %v425 = vpop.f32.mrb[0].mxu0
        %v426 = vadd.f32 0.0, %v425
        %v427 = vpop.f32.mrb[0].mxu0
        %428 = vmatprep.mubr.f32.mxu0 0.0
        %429 = vmatmul.mubr.f32.gmra.mrb[0].mxu0 %v315
        %v430 = vpop.f32.mrb[0].mxu0
        %v431 = vadd.f32 0.0, %v430
        %v432 = vpop.f32.mrb[0].mxu0
        %433 = vmatprep.mubr.f32.mxu0 0.0
        %434 = vmatmul.mubr.f32.gmra.mrb[0].mxu0 %v318
        %v435 = vpop.f32.mrb[0].mxu0
        %v436 = vadd.f32 0.0, %v435
        %v437 = vpop.f32.mrb[0].mxu0
        %438 = vmatprep.mubr.f32.mxu0 0.0
        %439 = vmatmul.mubr.f32.gmra.mrb[0].mxu0 %v321
        %v440 = vpop.f32.mrb[0].mxu0
        %v441 = vadd.f32 0.0, %v440
        %v442 = vpop.f32.mrb[0].mxu0
        %443 = vmatprep.mubr.f32.mxu0 0.0
        %444 = vmatmul.mubr.f32.gmra.mrb[0].mxu0 %v324
        %v445 = vpop.f32.mrb[0].mxu0
        %v446 = vadd.f32 0.0, %v445
        %v447 = vpop.f32.mrb[0].mxu0
        %448 = vmatprep.mubr.f32.mxu0 0.0
        %449 = vmatmul.mubr.f32.gmra.mrb[0].mxu0 %v327
        %v450 = vpop.f32.mrb[0].mxu0
        %v451 = vadd.f32 0.0, %v450
        %v452 = vpop.f32.mrb[0].mxu0
        %453 = vdwg.mxu0
        %v454 = vmax.f32 %v396, 0.0
        %v455 = vmax.f32 %v401, 0.0
        %v456 = vmax.f32 %v406, 0.0
        %v457 = vmax.f32 %v411, 0.0
        %v458 = vmax.f32 %v416, 0.0
        %v459 = vmax.f32 %v421, 0.0
        %v460 = vmax.f32 %v426, 0.0
        %v461 = vmax.f32 %v431, 0.0
        %v462 = vmax.f32 %v436, 0.0
        %v463 = vmax.f32 %v441, 0.0
        %v464 = vmax.f32 %v446, 0.0
        %v465 = vmax.f32 %v451, 0.0
        %v466 = vadd.f32 %v454, %v458
        %v467 = vadd.f32 %v455, %v459
        %v468 = vadd.f32 %v456, %v460
        %v469 = vadd.f32 %v457, %v461
        %v470 = vadd.f32 %v466, %v462
        %v471 = vadd.f32 %v467, %v463
        %v472 = vadd.f32 %v468, %v464
        %v473 = vadd.f32 %v469, %v465
        %vm474 = vcmask 15360
        %475 = vst.msk [vmem:[#allocation2 + $0x30] sm:$0xff] %vm474, 0.0
        %476 = vst.msk [vmem:[#allocation2 + $0x38] sm:$0xff] %vm474, 0.0
        %477 = vst.msk [vmem:[#allocation2 + $0x40] sm:$0xff] %vm474, 0.0
        %478 = vst.msk [vmem:[#allocation2 + $0x48] sm:$0xff] %vm474, 0.0
        %483 = vrot.lane.b32.xlu0 %v470, 2
        %v484 = vpop.permute.xlu0 %483
        %485 = vrot.lane.b32.xlu0 %v471, 2
        %v486 = vpop.permute.xlu0 %485
        %487 = vrot.lane.b32.xlu0 %v472, 2
        %v488 = vpop.permute.xlu0 %487
        %489 = vrot.lane.b32.xlu0 %v473, 2
        %v490 = vpop.permute.xlu0 %489
        %vm495 = vcmask 130064
        %496 = vst.msk [vmem:[#allocation2 + $0x30] sm:$0xff] %vm495, %v484
        %497 = vst.msk [vmem:[#allocation2 + $0x38] sm:$0xff] %vm495, %v486
        %498 = vst.msk [vmem:[#allocation2 + $0x40] sm:$0xff] %vm495, %v488
        %499 = vst.msk [vmem:[#allocation2 + $0x48] sm:$0xff] %vm495, %v490
        %vm500 = vcmask 7168
        %501 = vst.msk [vmem:[#allocation2 + $0x50] sm:$0xff] %vm500, 0.0
        %502 = vst.msk [vmem:[#allocation2 + $0x58] sm:$0xff] %vm500, 0.0
        %503 = vst.msk [vmem:[#allocation2 + $0x60] sm:$0xff] %vm500, 0.0
        %504 = vst.msk [vmem:[#allocation2 + $0x68] sm:$0xff] %vm500, 0.0
        %505 = vrot.lane.b32.xlu0 %v470, 1
        %v506 = vpop.permute.xlu0 %505
        %507 = vrot.lane.b32.xlu0 %v471, 1
        %v508 = vpop.permute.xlu0 %507
        %509 = vrot.lane.b32.xlu0 %v472, 1
        %v510 = vpop.permute.xlu0 %509
        %511 = vrot.lane.b32.xlu0 %v473, 1
        %v512 = vpop.permute.xlu0 %511
        %vm517 = vcmask 130056
        %518 = vst.msk [vmem:[#allocation2 + $0x50] sm:$0xff] %vm517, %v506
        %519 = vst.msk [vmem:[#allocation2 + $0x58] sm:$0xff] %vm517, %v508
        %520 = vst.msk [vmem:[#allocation2 + $0x60] sm:$0xff] %vm517, %v510
        %521 = vst.msk [vmem:[#allocation2 + $0x68] sm:$0xff] %vm517, %v512
        %522 = vst.msk [vmem:[#allocation2 + $0x70] sm:$0xff] %vm272, %v470
        %523 = vst.msk [vmem:[#allocation2 + $0x78] sm:$0xff] %vm272, %v471
        %524 = vst.msk [vmem:[#allocation2 + $0x80] sm:$0xff] %vm272, %v472
        %525 = vst.msk [vmem:[#allocation2 + $0x88] sm:$0xff] %vm272, %v473
        %vm526 = vcmask 130168
        %527 = vst.msk [vmem:[#allocation2 + $0x90] sm:$0xff] %vm526, 0.0
        %528 = vst.msk [vmem:[#allocation2 + $0x98] sm:$0xff] %vm526, 0.0
        %529 = vst.msk [vmem:[#allocation2 + $0xa0] sm:$0xff] %vm526, 0.0
        %530 = vst.msk [vmem:[#allocation2 + $0xa8] sm:$0xff] %vm526, 0.0
        %531 = vrot.lane.b32.xlu0 %v470, 127
        %v532 = vpop.permute.xlu0 %531
        %533 = vrot.lane.b32.xlu0 %v471, 127
        %v534 = vpop.permute.xlu0 %533
        %535 = vrot.lane.b32.xlu0 %v472, 127
        %v536 = vpop.permute.xlu0 %535
        %537 = vrot.lane.b32.xlu0 %v473, 127
        %v538 = vpop.permute.xlu0 %537
        %vm543 = vcmask 121856
        %544 = vst.msk [vmem:[#allocation2 + $0x90] sm:$0xff] %vm543, %v532
        %545 = vst.msk [vmem:[#allocation2 + $0x98] sm:$0xff] %vm543, %v534
        %546 = vst.msk [vmem:[#allocation2 + $0xa0] sm:$0xff] %vm543, %v536
        %547 = vst.msk [vmem:[#allocation2 + $0xa8] sm:$0xff] %vm543, %v538
        %vm548 = vcmask 130160
        %549 = vst.msk [vmem:[#allocation2 + $0xb0] sm:$0xff] %vm548, 0.0
        %550 = vst.msk [vmem:[#allocation2 + $0xb8] sm:$0xff] %vm548, 0.0
        %551 = vst.msk [vmem:[#allocation2 + $0xc0] sm:$0xff] %vm548, 0.0
        %552 = vst.msk [vmem:[#allocation2 + $0xc8] sm:$0xff] %vm548, 0.0
        %553 = vrot.lane.b32.xlu0 %v470, 126
        %v554 = vpop.permute.xlu0 %553
        %555 = vrot.lane.b32.xlu0 %v471, 126
        %v556 = vpop.permute.xlu0 %555
        %557 = vrot.lane.b32.xlu0 %v472, 126
        %v558 = vpop.permute.xlu0 %557
        %559 = vrot.lane.b32.xlu0 %v473, 126
        %v560 = vpop.permute.xlu0 %559
        %vm565 = vcmask 113664
        %566 = vst.msk [vmem:[#allocation2 + $0xb0] sm:$0xff] %vm565, %v554
        %567 = vst.msk [vmem:[#allocation2 + $0xb8] sm:$0xff] %vm565, %v556
        %568 = vst.msk [vmem:[#allocation2 + $0xc0] sm:$0xff] %vm565, %v558
        %569 = vst.msk [vmem:[#allocation2 + $0xc8] sm:$0xff] %vm565, %v560
        %570 = vst.msk [vmem:[#allocation2 + $0xd0] sm:$0xff] %vm272, 1.0
        %v571 = vld [vmem:[#allocation3] sm:$0xff]
        %v572 = vld [vmem:[#allocation3 + $0x8] sm:$0xff]
        %v573 = vld [vmem:[#allocation3 + $0x10] sm:$0xff]
        %v574 = vld [vmem:[#allocation3 + $0x18] sm:$0xff]
        %v575 = vld [vmem:[#allocation3 + $0x20] sm:$0xff]
        %v576 = vld [vmem:[#allocation3 + $0x28] sm:$0xff]
        %v577 = vld [vmem:[#allocation3 + $0x30] sm:$0xff]
        %v578 = vld [vmem:[#allocation3 + $0x38] sm:$0xff]
        %v579 = vld [vmem:[#allocation3 + $0x40] sm:$0xff]
        %v580 = vld [vmem:[#allocation3 + $0x48] sm:$0xff]
        %v581 = vld [vmem:[#allocation3 + $0x50] sm:$0xff]
        %v582 = vld [vmem:[#allocation3 + $0x58] sm:$0xff]
        %v583 = vld [vmem:[#allocation3 + $0x60] sm:$0xff]
        %v584 = vld [vmem:[#allocation3 + $0x68] sm:$0xff]
        %v585 = vld [vmem:[#allocation3 + $0x70] sm:$0xff]
        %v586 = vld [vmem:[#allocation3 + $0x78] sm:$0xff]
        %v587 = vld [vmem:[#allocation3 + $0x80] sm:$0xff]
        %v588 = vld [vmem:[#allocation3 + $0x88] sm:$0xff]
        %v589 = vld [vmem:[#allocation3 + $0x90] sm:$0xff]
        %v590 = vld [vmem:[#allocation3 + $0x98] sm:$0xff]
        %v591 = vld [vmem:[#allocation3 + $0xa0] sm:$0xff]
        %v592 = vld [vmem:[#allocation3 + $0xa8] sm:$0xff]
        %v593 = vld [vmem:[#allocation3 + $0xb0] sm:$0xff]
        %v594 = vld [vmem:[#allocation3 + $0xb8] sm:$0xff]
        %v595 = vld [vmem:[#allocation3 + $0xc0] sm:$0xff]
        %v596 = vld [vmem:[#allocation3 + $0xc8] sm:$0xff]
        %v597 = vld [vmem:[#allocation3 + $0xd0] sm:$0xff]
        %v598 = vld [vmem:[#allocation3 + $0xd8] sm:$0xff]
        %v599 = vld [vmem:[#allocation3 + $0xe0] sm:$0xff]
        %v600 = vld [vmem:[#allocation3 + $0xe8] sm:$0xff]
        %v601 = vld [vmem:[#allocation3 + $0xf0] sm:$0xff]
        %v602 = vld [vmem:[#allocation3 + $0xf8] sm:$0xff]
        %v603 = vld [vmem:[#allocation3 + $0x100] sm:$0xff]
        %v604 = vld [vmem:[#allocation3 + $0x108] sm:$0xff]
        %v605 = vld [vmem:[#allocation3 + $0x110] sm:$0xff]
        %v606 = vld [vmem:[#allocation3 + $0x118] sm:$0xff]
        %v607 = vld [vmem:[#allocation3 + $0x120] sm:$0xff]
        %v608 = vld [vmem:[#allocation3 + $0x128] sm:$0xff]
        %v609 = vld [vmem:[#allocation3 + $0x130] sm:$0xff]
        %v610 = vld [vmem:[#allocation3 + $0x138] sm:$0xff]
        %v611 = vld [vmem:[#allocation3 + $0x140] sm:$0xff]
        %v612 = vld [vmem:[#allocation3 + $0x148] sm:$0xff]
        %v613 = vld [vmem:[#allocation3 + $0x150] sm:$0xff]
        %v614 = vld [vmem:[#allocation3 + $0x158] sm:$0xff]
        %v615 = vld [vmem:[#allocation3 + $0x160] sm:$0xff]
        %v616 = vld [vmem:[#allocation3 + $0x168] sm:$0xff]
        %v617 = vld [vmem:[#allocation3 + $0x170] sm:$0xff]
        %v618 = vld [vmem:[#allocation3 + $0x178] sm:$0xff]
        %v619 = vld [vmem:[#allocation2] sm:$0xff]
        %v620 = vld [vmem:[#allocation2 + $0x8] sm:$0xff]
        %v621 = vld [vmem:[#allocation2 + $0x10] sm:$0xff]
        %v622 = vld [vmem:[#allocation2 + $0x18] sm:$0xff]
        %v623 = vld [vmem:[#allocation2 + $0x20] sm:$0xff]
        %v624 = vld [vmem:[#allocation2 + $0x28] sm:$0xff]
        %v625 = vld [vmem:[#allocation2 + $0x30] sm:$0xff]
        %v626 = vld [vmem:[#allocation2 + $0x38] sm:$0xff]
        %v627 = vld [vmem:[#allocation2 + $0x40] sm:$0xff]
        %v628 = vld [vmem:[#allocation2 + $0x48] sm:$0xff]
        %v629 = vld [vmem:[#allocation2 + $0x50] sm:$0xff]
        %v630 = vld [vmem:[#allocation2 + $0x58] sm:$0xff]
        %v631 = vld [vmem:[#allocation2 + $0x60] sm:$0xff]
        %v632 = vld [vmem:[#allocation2 + $0x68] sm:$0xff]
        %v633 = vld [vmem:[#allocation2 + $0x70] sm:$0xff]
        %v634 = vld [vmem:[#allocation2 + $0x78] sm:$0xff]
        %v635 = vld [vmem:[#allocation2 + $0x80] sm:$0xff]
        %v636 = vld [vmem:[#allocation2 + $0x88] sm:$0xff]
        %v637 = vld [vmem:[#allocation2 + $0x90] sm:$0xff]
        %v638 = vld [vmem:[#allocation2 + $0x98] sm:$0xff]
        %v639 = vld [vmem:[#allocation2 + $0xa0] sm:$0xff]
        %v640 = vld [vmem:[#allocation2 + $0xa8] sm:$0xff]
        %v641 = vld [vmem:[#allocation2 + $0xb0] sm:$0xff]
        %v642 = vld [vmem:[#allocation2 + $0xb8] sm:$0xff]
        %v643 = vld [vmem:[#allocation2 + $0xc0] sm:$0xff]
        %v644 = vld [vmem:[#allocation2 + $0xc8] sm:$0xff]
        %v645 = vld [vmem:[#allocation2 + $0xd0] sm:$0xff]
        %vm646 = vcmask 719872
        %v648 = vsel %vm646, %v572, 0
        %v651 = vsel %vm646, %v574, 0
        %v654 = vsel %vm646, %v576, 0
        %v657 = vsel %vm646, %v578, 0
        %v660 = vsel %vm646, %v580, 0
        %v663 = vsel %vm646, %v582, 0
        %v666 = vsel %vm646, %v584, 0
        %v669 = vsel %vm646, %v586, 0
        %v672 = vsel %vm646, %v588, 0
        %v675 = vsel %vm646, %v590, 0
        %v678 = vsel %vm646, %v592, 0
        %v681 = vsel %vm646, %v594, 0
        %v684 = vsel %vm646, %v596, 0
        %v687 = vsel %vm646, %v598, 0
        %v690 = vsel %vm646, %v600, 0
        %v693 = vsel %vm646, %v602, 0
        %v696 = vsel %vm646, %v604, 0
        %v699 = vsel %vm646, %v606, 0
        %v702 = vsel %vm646, %v608, 0
        %v705 = vsel %vm646, %v610, 0
        %v708 = vsel %vm646, %v612, 0
        %v711 = vsel %vm646, %v614, 0
        %v714 = vsel %vm646, %v616, 0
        %v717 = vsel %vm646, %v618, 0
        %719 = vmatprep.subr.mxu0 0.0
        %720 = vmatpush1.msra.mxu0 %v619
        %721 = vmatprep.subr.mxu0 0.0
        %722 = vmatpush1.msra.mxu0 %v620
        %723 = vmatprep.subr.mxu0 0.0
        %724 = vmatpush1.msra.mxu0 %v621
        %725 = vmatprep.subr.mxu0 0.0
        %726 = vmatpush1.msra.mxu0 %v622
        %727 = vmatprep.subr.mxu0 0.0
        %728 = vmatpush1.msra.mxu0 %v623
        %729 = vmatprep.subr.mxu0 0.0
        %730 = vmatpush1.msra.mxu0 %v624
        %731 = vmatprep.subr.mxu0 0.0
        %732 = vmatpush1.msra.mxu0 %v625
        %733 = vmatprep.subr.mxu0 0.0
        %734 = vmatpush1.msra.mxu0 %v626
        %735 = vmatprep.subr.mxu0 0.0
        %736 = vmatpush1.msra.mxu0 %v627
        %737 = vmatprep.subr.mxu0 0.0
        %738 = vmatpush1.msra.mxu0 %v628
        %739 = vmatprep.subr.mxu0 0.0
        %740 = vmatpush1.msra.mxu0 %v629
        %741 = vmatprep.subr.mxu0 0.0
        %742 = vmatpush1.msra.mxu0 %v630
        %743 = vmatprep.subr.mxu0 0.0
        %744 = vmatpush1.msra.mxu0 %v631
        %745 = vmatprep.subr.mxu0 0.0
        %746 = vmatpush1.msra.mxu0 %v632
        %747 = vmatprep.subr.mxu0 0.0
        %748 = vmatpush1.msra.mxu0 %v633
        %749 = vmatprep.subr.mxu0 0.0
        %750 = vmatpush1.msra.mxu0 %v634
        %751 = vmatprep.subr.mxu0 0.0
        %752 = vmatpush1.msra.mxu0 %v635
        %753 = vmatprep.subr.mxu0 0.0
        %754 = vmatpush1.msra.mxu0 %v636
        %755 = vmatprep.subr.mxu0 0.0
        %756 = vmatpush1.msra.mxu0 %v637
        %757 = vmatprep.subr.mxu0 0.0
        %758 = vmatpush1.msra.mxu0 %v638
        %759 = vmatprep.subr.mxu0 0.0
        %760 = vmatpush1.msra.mxu0 %v639
        %761 = vmatprep.subr.mxu0 0.0
        %762 = vmatpush1.msra.mxu0 %v640
        %763 = vmatprep.subr.mxu0 0.0
        %764 = vmatpush1.msra.mxu0 %v641
        %765 = vmatprep.subr.mxu0 0.0
        %766 = vmatpush1.msra.mxu0 %v642
        %767 = vmatprep.subr.mxu0 0.0
        %768 = vmatpush1.msra.mxu0 %v643
        %769 = vmatprep.subr.mxu0 0.0
        %770 = vmatpush1.msra.mxu0 %v644
        %771 = vmatprep.subr.mxu0 0.0
        %772 = vmatpush1.msra.mxu0 %v645
        %773 = vmatprep.subr.mxu0 0.0
        %774 = vmatpush1.msra.mxu0 0.0
        %775 = vmatprep.subr.mxu0 0.0
        %776 = vmatpush1.msra.mxu0 0.0
        %777 = vmatprep.subr.mxu0 0.0
        %778 = vmatpush1.msra.mxu0 0.0
        %779 = vmatprep.subr.mxu0 0.0
        %780 = vmatpush1.msra.mxu0 0.0
        %781 = vmatprep.subr.mxu0 0.0
        %782 = vmatpush1.msra.mxu0 0.0
        %783 = vmatprep.mubr.f32.mxu0 %v648
        %784 = vmatmul.mubr.f32.gmra.mrb[0].mxu0 %v571
        %v785 = vpop.f32.mrb[0].mxu0
        %v786 = vadd.f32 0.0, %v785
        %v787 = vpop.f32.mrb[0].mxu0
        %788 = vmatprep.mubr.f32.mxu0 %v651
        %789 = vmatmul.mubr.f32.gmra.mrb[0].mxu0 %v573
        %v790 = vpop.f32.mrb[0].mxu0
        %v791 = vadd.f32 0.0, %v790
        %v792 = vpop.f32.mrb[0].mxu0
        %793 = vmatprep.mubr.f32.mxu0 %v654
        %794 = vmatmul.mubr.f32.gmra.mrb[0].mxu0 %v575
        %v795 = vpop.f32.mrb[0].mxu0
        %v796 = vadd.f32 0.0, %v795
        %v797 = vpop.f32.mrb[0].mxu0
        %798 = vmatprep.mubr.f32.mxu0 %v657
        %799 = vmatmul.mubr.f32.gmra.mrb[0].mxu0 %v577
        %v800 = vpop.f32.mrb[0].mxu0
        %v801 = vadd.f32 0.0, %v800
        %v802 = vpop.f32.mrb[0].mxu0
        %803 = vmatprep.mubr.f32.mxu0 %v660
        %804 = vmatmul.mubr.f32.gmra.mrb[0].mxu0 %v579
        %v805 = vpop.f32.mrb[0].mxu0
        %v806 = vadd.f32 0.0, %v805
        %v807 = vpop.f32.mrb[0].mxu0
        %808 = vmatprep.mubr.f32.mxu0 %v663
        %809 = vmatmul.mubr.f32.gmra.mrb[0].mxu0 %v581
        %v810 = vpop.f32.mrb[0].mxu0
        %v811 = vadd.f32 0.0, %v810
        %v812 = vpop.f32.mrb[0].mxu0
        %813 = vmatprep.mubr.f32.mxu0 %v666
        %814 = vmatmul.mubr.f32.gmra.mrb[0].mxu0 %v583
        %v815 = vpop.f32.mrb[0].mxu0
        %v816 = vadd.f32 0.0, %v815
        %v817 = vpop.f32.mrb[0].mxu0
        %818 = vmatprep.mubr.f32.mxu0 %v669
        %819 = vmatmul.mubr.f32.gmra.mrb[0].mxu0 %v585
        %v820 = vpop.f32.mrb[0].mxu0
        %v821 = vadd.f32 0.0, %v820
        %v822 = vpop.f32.mrb[0].mxu0
        %823 = vmatprep.mubr.f32.mxu0 %v672
        %824 = vmatmul.mubr.f32.gmra.mrb[0].mxu0 %v587
        %v825 = vpop.f32.mrb[0].mxu0
        %v826 = vadd.f32 0.0, %v825
        %v827 = vpop.f32.mrb[0].mxu0
        %828 = vmatprep.mubr.f32.mxu0 %v675
        %829 = vmatmul.mubr.f32.gmra.mrb[0].mxu0 %v589
        %v830 = vpop.f32.mrb[0].mxu0
        %v831 = vadd.f32 0.0, %v830
        %v832 = vpop.f32.mrb[0].mxu0
        %833 = vmatprep.mubr.f32.mxu0 %v678
        %834 = vmatmul.mubr.f32.gmra.mrb[0].mxu0 %v591
        %v835 = vpop.f32.mrb[0].mxu0
        %v836 = vadd.f32 0.0, %v835
        %v837 = vpop.f32.mrb[0].mxu0
        %838 = vmatprep.mubr.f32.mxu0 %v681
        %839 = vmatmul.mubr.f32.gmra.mrb[0].mxu0 %v593
        %v840 = vpop.f32.mrb[0].mxu0
        %v841 = vadd.f32 0.0, %v840
        %v842 = vpop.f32.mrb[0].mxu0
        %843 = vmatprep.mubr.f32.mxu0 %v684
        %844 = vmatmul.mubr.f32.gmra.mrb[0].mxu0 %v595
        %v845 = vpop.f32.mrb[0].mxu0
        %v846 = vadd.f32 0.0, %v845
        %v847 = vpop.f32.mrb[0].mxu0
        %848 = vmatprep.mubr.f32.mxu0 %v687
        %849 = vmatmul.mubr.f32.gmra.mrb[0].mxu0 %v597
        %v850 = vpop.f32.mrb[0].mxu0
        %v851 = vadd.f32 0.0, %v850
        %v852 = vpop.f32.mrb[0].mxu0
        %853 = vmatprep.mubr.f32.mxu0 %v690
        %854 = vmatmul.mubr.f32.gmra.mrb[0].mxu0 %v599
        %v855 = vpop.f32.mrb[0].mxu0
        %v856 = vadd.f32 0.0, %v855
        %v857 = vpop.f32.mrb[0].mxu0
        %858 = vmatprep.mubr.f32.mxu0 %v693
        %859 = vmatmul.mubr.f32.gmra.mrb[0].mxu0 %v601
        %v860 = vpop.f32.mrb[0].mxu0
        %v861 = vadd.f32 0.0, %v860
        %v862 = vpop.f32.mrb[0].mxu0
        %863 = vmatprep.mubr.f32.mxu0 %v696
        %864 = vmatmul.mubr.f32.gmra.mrb[0].mxu0 %v603
        %v865 = vpop.f32.mrb[0].mxu0
        %v866 = vadd.f32 0.0, %v865
        %v867 = vpop.f32.mrb[0].mxu0
        %868 = vmatprep.mubr.f32.mxu0 %v699
        %869 = vmatmul.mubr.f32.gmra.mrb[0].mxu0 %v605
        %v870 = vpop.f32.mrb[0].mxu0
        %v871 = vadd.f32 0.0, %v870
        %v872 = vpop.f32.mrb[0].mxu0
        %873 = vmatprep.mubr.f32.mxu0 %v702
        %874 = vmatmul.mubr.f32.gmra.mrb[0].mxu0 %v607
        %v875 = vpop.f32.mrb[0].mxu0
        %v876 = vadd.f32 0.0, %v875
        %v877 = vpop.f32.mrb[0].mxu0
        %878 = vmatprep.mubr.f32.mxu0 %v705
        %879 = vmatmul.mubr.f32.gmra.mrb[0].mxu0 %v609
        %v880 = vpop.f32.mrb[0].mxu0
        %v881 = vadd.f32 0.0, %v880
        %v882 = vpop.f32.mrb[0].mxu0
        %883 = vmatprep.mubr.f32.mxu0 %v708
        %884 = vmatmul.mubr.f32.gmra.mrb[0].mxu0 %v611
        %v885 = vpop.f32.mrb[0].mxu0
        %v886 = vadd.f32 0.0, %v885
        %v887 = vpop.f32.mrb[0].mxu0
        %888 = vmatprep.mubr.f32.mxu0 %v711
        %889 = vmatmul.mubr.f32.gmra.mrb[0].mxu0 %v613
        %v890 = vpop.f32.mrb[0].mxu0
        %v891 = vadd.f32 0.0, %v890
        %v892 = vpop.f32.mrb[0].mxu0
        %893 = vmatprep.mubr.f32.mxu0 %v714
        %894 = vmatmul.mubr.f32.gmra.mrb[0].mxu0 %v615
        %v895 = vpop.f32.mrb[0].mxu0
        %v896 = vadd.f32 0.0, %v895
        %v897 = vpop.f32.mrb[0].mxu0
        %898 = vmatprep.mubr.f32.mxu0 %v717
        %899 = vmatmul.mubr.f32.gmra.mrb[0].mxu0 %v617
        %v900 = vpop.f32.mrb[0].mxu0
        %v901 = vadd.f32 0.0, %v900
        %v902 = vpop.f32.mrb[0].mxu0
        %903 = vdwg.mxu0
        %v904 = vmax.f32 %v786, 0.0
        %v905 = vmax.f32 %v791, 0.0
        %v906 = vmax.f32 %v796, 0.0
        %v907 = vmax.f32 %v801, 0.0
        %v908 = vmax.f32 %v806, 0.0
        %v909 = vmax.f32 %v811, 0.0
        %v910 = vmax.f32 %v816, 0.0
        %v911 = vmax.f32 %v821, 0.0
        %v912 = vmax.f32 %v826, 0.0
        %v913 = vmax.f32 %v831, 0.0
        %v914 = vmax.f32 %v836, 0.0
        %v915 = vmax.f32 %v841, 0.0
        %v916 = vmax.f32 %v846, 0.0
        %v917 = vmax.f32 %v851, 0.0
        %v918 = vmax.f32 %v856, 0.0
        %v919 = vmax.f32 %v861, 0.0
        %v920 = vmax.f32 %v866, 0.0
        %v921 = vmax.f32 %v871, 0.0
        %v922 = vmax.f32 %v876, 0.0
        %v923 = vmax.f32 %v881, 0.0
        %v924 = vmax.f32 %v886, 0.0
        %v925 = vmax.f32 %v891, 0.0
        %v926 = vmax.f32 %v896, 0.0
        %v927 = vmax.f32 %v901, 0.0
        %v928 = vadd.f32 %v904, %v908
        %v929 = vadd.f32 %v905, %v909
        %v930 = vadd.f32 %v906, %v910
        %v931 = vadd.f32 %v907, %v911
        %v932 = vadd.f32 %v928, %v912
        %v933 = vadd.f32 %v929, %v913
        %v934 = vadd.f32 %v930, %v914
        %v935 = vadd.f32 %v931, %v915
        %v936 = vadd.f32 %v932, %v916
        %v937 = vadd.f32 %v933, %v917
        %v938 = vadd.f32 %v934, %v918
        %v939 = vadd.f32 %v935, %v919
        %v940 = vadd.f32 %v936, %v920
        %v941 = vadd.f32 %v937, %v921
        %v942 = vadd.f32 %v938, %v922
        %v943 = vadd.f32 %v939, %v923
        %v944 = vadd.f32 %v940, %v924
        %v945 = vadd.f32 %v941, %v925
        %v946 = vadd.f32 %v942, %v926
        %v947 = vadd.f32 %v943, %v927
        %948 = vst.msk [vmem:[#allocation2 + $0xd8] sm:$0xff] %vm474, 0.0
        %949 = vst.msk [vmem:[#allocation2 + $0xe0] sm:$0xff] %vm474, 0.0
        %950 = vst.msk [vmem:[#allocation2 + $0xe8] sm:$0xff] %vm474, 0.0
        %951 = vst.msk [vmem:[#allocation2 + $0xf0] sm:$0xff] %vm474, 0.0
        %956 = vrot.lane.b32.xlu0 %v944, 2
        %v957 = vpop.permute.xlu0 %956
        %958 = vrot.lane.b32.xlu0 %v945, 2
        %v959 = vpop.permute.xlu0 %958
        %960 = vrot.lane.b32.xlu0 %v946, 2
        %v961 = vpop.permute.xlu0 %960
        %962 = vrot.lane.b32.xlu0 %v947, 2
        %v963 = vpop.permute.xlu0 %962
        %968 = vst.msk [vmem:[#allocation2 + $0xd8] sm:$0xff] %vm495, %v957
        %969 = vst.msk [vmem:[#allocation2 + $0xe0] sm:$0xff] %vm495, %v959
        %970 = vst.msk [vmem:[#allocation2 + $0xe8] sm:$0xff] %vm495, %v961
        %971 = vst.msk [vmem:[#allocation2 + $0xf0] sm:$0xff] %vm495, %v963
        %972 = vst.msk [vmem:[#allocation2 + $0xf8] sm:$0xff] %vm500, 0.0
        %973 = vst.msk [vmem:[#allocation2 + $0x100] sm:$0xff] %vm500, 0.0
        %974 = vst.msk [vmem:[#allocation2 + $0x108] sm:$0xff] %vm500, 0.0
        %975 = vst.msk [vmem:[#allocation2 + $0x110] sm:$0xff] %vm500, 0.0
        %976 = vrot.lane.b32.xlu0 %v944, 1
        %v977 = vpop.permute.xlu0 %976
        %978 = vrot.lane.b32.xlu0 %v945, 1
        %v979 = vpop.permute.xlu0 %978
        %980 = vrot.lane.b32.xlu0 %v946, 1
        %v981 = vpop.permute.xlu0 %980
        %982 = vrot.lane.b32.xlu0 %v947, 1
        %v983 = vpop.permute.xlu0 %982
        %988 = vst.msk [vmem:[#allocation2 + $0xf8] sm:$0xff] %vm517, %v977
        %989 = vst.msk [vmem:[#allocation2 + $0x100] sm:$0xff] %vm517, %v979
        %990 = vst.msk [vmem:[#allocation2 + $0x108] sm:$0xff] %vm517, %v981
        %991 = vst.msk [vmem:[#allocation2 + $0x110] sm:$0xff] %vm517, %v983
        %992 = vst.msk [vmem:[#allocation2 + $0x118] sm:$0xff] %vm272, %v944
        %993 = vst.msk [vmem:[#allocation2 + $0x120] sm:$0xff] %vm272, %v945
        %994 = vst.msk [vmem:[#allocation2 + $0x128] sm:$0xff] %vm272, %v946
        %995 = vst.msk [vmem:[#allocation2 + $0x130] sm:$0xff] %vm272, %v947
        %996 = vst.msk [vmem:[#allocation2 + $0x138] sm:$0xff] %vm526, 0.0
        %997 = vst.msk [vmem:[#allocation2 + $0x140] sm:$0xff] %vm526, 0.0
        %998 = vst.msk [vmem:[#allocation2 + $0x148] sm:$0xff] %vm526, 0.0
        %999 = vst.msk [vmem:[#allocation2 + $0x150] sm:$0xff] %vm526, 0.0
        %1000 = vrot.lane.b32.xlu0 %v944, 127
        %v1001 = vpop.permute.xlu0 %1000
        %1002 = vrot.lane.b32.xlu0 %v945, 127
        %v1003 = vpop.permute.xlu0 %1002
        %1004 = vrot.lane.b32.xlu0 %v946, 127
        %v1005 = vpop.permute.xlu0 %1004
        %1006 = vrot.lane.b32.xlu0 %v947, 127
        %v1007 = vpop.permute.xlu0 %1006
        %1012 = vst.msk [vmem:[#allocation2 + $0x138] sm:$0xff] %vm543, %v1001
        %1013 = vst.msk [vmem:[#allocation2 + $0x140] sm:$0xff] %vm543, %v1003
        %1014 = vst.msk [vmem:[#allocation2 + $0x148] sm:$0xff] %vm543, %v1005
        %1015 = vst.msk [vmem:[#allocation2 + $0x150] sm:$0xff] %vm543, %v1007
        %1016 = vst.msk [vmem:[#allocation2 + $0x158] sm:$0xff] %vm548, 0.0
        %1017 = vst.msk [vmem:[#allocation2 + $0x160] sm:$0xff] %vm548, 0.0
        %1018 = vst.msk [vmem:[#allocation2 + $0x168] sm:$0xff] %vm548, 0.0
        %1019 = vst.msk [vmem:[#allocation2 + $0x170] sm:$0xff] %vm548, 0.0
        %1020 = vrot.lane.b32.xlu0 %v944, 126
        %v1021 = vpop.permute.xlu0 %1020
        %1022 = vrot.lane.b32.xlu0 %v945, 126
        %v1023 = vpop.permute.xlu0 %1022
        %1024 = vrot.lane.b32.xlu0 %v946, 126
        %v1025 = vpop.permute.xlu0 %1024
        %1026 = vrot.lane.b32.xlu0 %v947, 126
        %v1027 = vpop.permute.xlu0 %1026
        %1032 = vst.msk [vmem:[#allocation2 + $0x158] sm:$0xff] %vm565, %v1021
        %1033 = vst.msk [vmem:[#allocation2 + $0x160] sm:$0xff] %vm565, %v1023
        %1034 = vst.msk [vmem:[#allocation2 + $0x168] sm:$0xff] %vm565, %v1025
        %1035 = vst.msk [vmem:[#allocation2 + $0x170] sm:$0xff] %vm565, %v1027
        %1036 = vst.msk [vmem:[#allocation2 + $0x178] sm:$0xff] %vm272, 1.0
        %v1037 = vld [vmem:[%s3] sm:$0xff]
        %v1038 = vld [vmem:[%s3 + $0x8] sm:$0xff]
        %v1039 = vld [vmem:[%s3 + $0x10] sm:$0xff]
        %v1040 = vld [vmem:[%s3 + $0x18] sm:$0x1]
        %v1041 = vld [vmem:[%s3 + $0x20] sm:$0x1]
        %v1042 = vld [vmem:[%s3 + $0x28] sm:$0x1]
        %v1043 = vld [vmem:[#allocation2] sm:$0xff]
        %v1044 = vld [vmem:[#allocation2 + $0x8] sm:$0xff]
        %v1045 = vld [vmem:[#allocation2 + $0x10] sm:$0xff]
        %v1046 = vld [vmem:[#allocation2 + $0x18] sm:$0xff]
        %v1047 = vld [vmem:[#allocation2 + $0x20] sm:$0xff]
        %v1048 = vld [vmem:[#allocation2 + $0x28] sm:$0xff]
        %v1049 = vld [vmem:[#allocation2 + $0x30] sm:$0xff]
        %v1050 = vld [vmem:[#allocation2 + $0x38] sm:$0xff]
        %v1051 = vld [vmem:[#allocation2 + $0x40] sm:$0xff]
        %v1052 = vld [vmem:[#allocation2 + $0x48] sm:$0xff]
        %v1053 = vld [vmem:[#allocation2 + $0x50] sm:$0xff]
        %v1054 = vld [vmem:[#allocation2 + $0x58] sm:$0xff]
        %v1055 = vld [vmem:[#allocation2 + $0x60] sm:$0xff]
        %v1056 = vld [vmem:[#allocation2 + $0x68] sm:$0xff]
        %v1057 = vld [vmem:[#allocation2 + $0x70] sm:$0xff]
        %v1058 = vld [vmem:[#allocation2 + $0x78] sm:$0xff]
        %v1059 = vld [vmem:[#allocation2 + $0x80] sm:$0xff]
        %v1060 = vld [vmem:[#allocation2 + $0x88] sm:$0xff]
        %v1061 = vld [vmem:[#allocation2 + $0x90] sm:$0xff]
        %v1062 = vld [vmem:[#allocation2 + $0x98] sm:$0xff]
        %v1063 = vld [vmem:[#allocation2 + $0xa0] sm:$0xff]
        %v1064 = vld [vmem:[#allocation2 + $0xa8] sm:$0xff]
        %v1065 = vld [vmem:[#allocation2 + $0xb0] sm:$0xff]
        %v1066 = vld [vmem:[#allocation2 + $0xb8] sm:$0xff]
        %v1067 = vld [vmem:[#allocation2 + $0xc0] sm:$0xff]
        %v1068 = vld [vmem:[#allocation2 + $0xc8] sm:$0xff]
        %v1069 = vld [vmem:[#allocation2 + $0xd0] sm:$0xff]
        %v1070 = vld [vmem:[#allocation2 + $0xd8] sm:$0xff]
        %v1071 = vld [vmem:[#allocation2 + $0xe0] sm:$0xff]
        %v1072 = vld [vmem:[#allocation2 + $0xe8] sm:$0xff]
        %v1073 = vld [vmem:[#allocation2 + $0xf0] sm:$0xff]
        %v1074 = vld [vmem:[#allocation2 + $0xf8] sm:$0xff]
        %v1075 = vld [vmem:[#allocation2 + $0x100] sm:$0xff]
        %v1076 = vld [vmem:[#allocation2 + $0x108] sm:$0xff]
        %v1077 = vld [vmem:[#allocation2 + $0x110] sm:$0xff]
        %v1078 = vld [vmem:[#allocation2 + $0x118] sm:$0xff]
        %v1079 = vld [vmem:[#allocation2 + $0x120] sm:$0xff]
        %v1080 = vld [vmem:[#allocation2 + $0x128] sm:$0xff]
        %v1081 = vld [vmem:[#allocation2 + $0x130] sm:$0xff]
        %v1082 = vld [vmem:[#allocation2 + $0x138] sm:$0xff]
        %v1083 = vld [vmem:[#allocation2 + $0x140] sm:$0xff]
        %v1084 = vld [vmem:[#allocation2 + $0x148] sm:$0xff]
        %v1085 = vld [vmem:[#allocation2 + $0x150] sm:$0xff]
        %v1086 = vld [vmem:[#allocation2 + $0x158] sm:$0xff]
        %v1087 = vld [vmem:[#allocation2 + $0x160] sm:$0xff]
        %v1088 = vld [vmem:[#allocation2 + $0x168] sm:$0xff]
        %v1089 = vld [vmem:[#allocation2 + $0x170] sm:$0xff]
        %v1090 = vld [vmem:[#allocation2 + $0x178] sm:$0xff]
        %1091 = vmatprep.subr.mxu0 0.0
        %1092 = vmatpush1.msra.mxu0 %v1043
        %1093 = vmatprep.subr.mxu0 0.0
        %1094 = vmatpush1.msra.mxu0 %v1044
        %1095 = vmatprep.subr.mxu0 0.0
        %1096 = vmatpush1.msra.mxu0 %v1045
        %1097 = vmatprep.subr.mxu0 0.0
        %1098 = vmatpush1.msra.mxu0 %v1046
        %1099 = vmatprep.subr.mxu0 0.0
        %1100 = vmatpush1.msra.mxu0 %v1047
        %1101 = vmatprep.subr.mxu0 0.0
        %1102 = vmatpush1.msra.mxu0 %v1048
        %1103 = vmatprep.subr.mxu0 0.0
        %1104 = vmatpush1.msra.mxu0 %v1049
        %1105 = vmatprep.subr.mxu0 0.0
        %1106 = vmatpush1.msra.mxu0 %v1050
        %1107 = vmatprep.subr.mxu0 0.0
        %1108 = vmatpush1.msra.mxu0 %v1051
        %1109 = vmatprep.subr.mxu0 0.0
        %1110 = vmatpush1.msra.mxu0 %v1052
        %1111 = vmatprep.subr.mxu0 0.0
        %1112 = vmatpush1.msra.mxu0 %v1053
        %1113 = vmatprep.subr.mxu0 0.0
        %1114 = vmatpush1.msra.mxu0 %v1054
        %1115 = vmatprep.subr.mxu0 0.0
        %1116 = vmatpush1.msra.mxu0 %v1055
        %1117 = vmatprep.subr.mxu0 0.0
        %1118 = vmatpush1.msra.mxu0 %v1056
        %1119 = vmatprep.subr.mxu0 0.0
        %1120 = vmatpush1.msra.mxu0 %v1057
        %1121 = vmatprep.subr.mxu0 0.0
        %1122 = vmatpush1.msra.mxu0 %v1058
        %1123 = vmatprep.subr.mxu0 0.0
        %1124 = vmatpush1.msra.mxu0 %v1059
        %1125 = vmatprep.subr.mxu0 0.0
        %1126 = vmatpush1.msra.mxu0 %v1060
        %1127 = vmatprep.subr.mxu0 0.0
        %1128 = vmatpush1.msra.mxu0 %v1061
        %1129 = vmatprep.subr.mxu0 0.0
        %1130 = vmatpush1.msra.mxu0 %v1062
        %1131 = vmatprep.subr.mxu0 0.0
        %1132 = vmatpush1.msra.mxu0 %v1063
        %1133 = vmatprep.subr.mxu0 0.0
        %1134 = vmatpush1.msra.mxu0 %v1064
        %1135 = vmatprep.subr.mxu0 0.0
        %1136 = vmatpush1.msra.mxu0 %v1065
        %1137 = vmatprep.subr.mxu0 0.0
        %1138 = vmatpush1.msra.mxu0 %v1066
        %1139 = vmatprep.subr.mxu0 0.0
        %1140 = vmatpush1.msra.mxu0 %v1067
        %1141 = vmatprep.subr.mxu0 0.0
        %1142 = vmatpush1.msra.mxu0 %v1068
        %1143 = vmatprep.subr.mxu0 0.0
        %1144 = vmatpush1.msra.mxu0 %v1069
        %1145 = vmatprep.subr.mxu0 0.0
        %1146 = vmatpush1.msra.mxu0 %v1070
        %1147 = vmatprep.subr.mxu0 0.0
        %1148 = vmatpush1.msra.mxu0 %v1071
        %1149 = vmatprep.subr.mxu0 0.0
        %1150 = vmatpush1.msra.mxu0 %v1072
        %1151 = vmatprep.subr.mxu0 0.0
        %1152 = vmatpush1.msra.mxu0 %v1073
        %1153 = vmatprep.subr.mxu0 0.0
        %1154 = vmatpush1.msra.mxu0 %v1074
        %1155 = vmatprep.mubr.f32.mxu0 %v1038
        %1156 = vmatmul.mubr.f32.gmra.mrb[0].mxu0 %v1037
        %v1157 = vpop.f32.mrb[0].mxu0
        %v1158 = vadd.f32 0.0, %v1157
        %v1159 = vpop.f32.mrb[0].mxu0
        %1160 = vmatprep.mubr.f32.mxu0 %v1041
        %1161 = vmatmul.mubr.f32.gmra.mrb[0].mxu0 %v1040
        %v1162 = vpop.f32.mrb[0].mxu0
        %v1163 = vadd.f32 0.0, %v1162
        %v1164 = vpop.f32.mrb[0].mxu0
        %1165 = vdwg.mxu0
        %1166 = vmatprep.subr.mxu0 0.0
        %1167 = vmatpush1.msra.mxu0 %v1075
        %1168 = vmatprep.subr.mxu0 0.0
        %1169 = vmatpush1.msra.mxu0 %v1076
        %1170 = vmatprep.subr.mxu0 0.0
        %1171 = vmatpush1.msra.mxu0 %v1077
        %1172 = vmatprep.subr.mxu0 0.0
        %1173 = vmatpush1.msra.mxu0 %v1078
        %1174 = vmatprep.subr.mxu0 0.0
        %1175 = vmatpush1.msra.mxu0 %v1079
        %1176 = vmatprep.subr.mxu0 0.0
        %1177 = vmatpush1.msra.mxu0 %v1080
        %1178 = vmatprep.subr.mxu0 0.0
        %1179 = vmatpush1.msra.mxu0 %v1081
        %1180 = vmatprep.subr.mxu0 0.0
        %1181 = vmatpush1.msra.mxu0 %v1082
        %1182 = vmatprep.subr.mxu0 0.0
        %1183 = vmatpush1.msra.mxu0 %v1083
        %1184 = vmatprep.subr.mxu0 0.0
        %1185 = vmatpush1.msra.mxu0 %v1084
        %1186 = vmatprep.subr.mxu0 0.0
        %1187 = vmatpush1.msra.mxu0 %v1085
        %1188 = vmatprep.subr.mxu0 0.0
        %1189 = vmatpush1.msra.mxu0 %v1086
        %1190 = vmatprep.subr.mxu0 0.0
        %1191 = vmatpush1.msra.mxu0 %v1087
        %1192 = vmatprep.subr.mxu0 0.0
        %1193 = vmatpush1.msra.mxu0 %v1088
        %1194 = vmatprep.subr.mxu0 0.0
        %1195 = vmatpush1.msra.mxu0 %v1089
        %1196 = vmatprep.subr.mxu0 0.0
        %1197 = vmatpush1.msra.mxu0 %v1090
        %1198 = vmatprep.subr.mxu0 0.0
        %1199 = vmatpush1.msra.mxu0 0.0
        %1200 = vmatprep.subr.mxu0 0.0
        %1201 = vmatpush1.msra.mxu0 0.0
        %1202 = vmatprep.subr.mxu0 0.0
        %1203 = vmatpush1.msra.mxu0 0.0
        %1204 = vmatprep.subr.mxu0 0.0
        %1205 = vmatpush1.msra.mxu0 0.0
        %1206 = vmatprep.subr.mxu0 0.0
        %1207 = vmatpush1.msra.mxu0 0.0
        %1208 = vmatprep.subr.mxu0 0.0
        %1209 = vmatpush1.msra.mxu0 0.0
        %1210 = vmatprep.subr.mxu0 0.0
        %1211 = vmatpush1.msra.mxu0 0.0
        %1212 = vmatprep.subr.mxu0 0.0
        %1213 = vmatpush1.msra.mxu0 0.0
        %1214 = vmatprep.subr.mxu0 0.0
        %1215 = vmatpush1.msra.mxu0 0.0
        %1216 = vmatprep.subr.mxu0 0.0
        %1217 = vmatpush1.msra.mxu0 0.0
        %1218 = vmatprep.subr.mxu0 0.0
        %1219 = vmatpush1.msra.mxu0 0.0
        %1220 = vmatprep.subr.mxu0 0.0
        %1221 = vmatpush1.msra.mxu0 0.0
        %1222 = vmatprep.subr.mxu0 0.0
        %1223 = vmatpush1.msra.mxu0 0.0
        %1224 = vmatprep.subr.mxu0 0.0
        %1225 = vmatpush1.msra.mxu0 0.0
        %1226 = vmatprep.subr.mxu0 0.0
        %1227 = vmatpush1.msra.mxu0 0.0
        %1228 = vmatprep.subr.mxu0 0.0
        %1229 = vmatpush1.msra.mxu0 0.0
        %1230 = vmatprep.mubr.f32.mxu0 0.0
        %1231 = vmatmul.mubr.f32.gmra.mrb[0].mxu0 %v1039
        %v1232 = vpop.f32.mrb[0].mxu0
        %v1233 = vadd.f32 %v1158, %v1232
        %v1234 = vpop.f32.mrb[0].mxu0
        %1235 = vmatprep.mubr.f32.mxu0 0.0
        %1236 = vmatmul.mubr.f32.gmra.mrb[0].mxu0 %v1042
        %v1237 = vpop.f32.mrb[0].mxu0
        %v1238 = vadd.f32 %v1163, %v1237
        %v1239 = vpop.f32.mrb[0].mxu0
        %1240 = vdwg.mxu0
        %v1241 = vxor.u32 %v1233, 2147483648
        %v1242 = vxor.u32 %v1238, 2147483648
        %v1243 = vmul.f32 %v1241, 1.442695
        %v1244 = vpow.pop %v1243
        %v1245 = vmul.f32 %v1242, 1.442695
        %v1246 = vpow.pop %v1245
        %v1247 = vadd.f32 %v1244, 1.0
        %v1248 = vadd.f32 %v1246, 1.0
        %v1249 = vrcp.pop %v1247
        %v1250 = vmul.f32 1.0, %v1249
        %v1251 = vrcp.pop %v1248
        %v1252 = vmul.f32 1.0, %v1251
        %v1253 = vld [vmem:[%s4] sm:$0xff]
        %v1254 = vld [vmem:[%s4 + $0x8] sm:$0x1]
        %1256 = vset.pattern.permute.xlu0 0
        %1257 = vperm.xlu0 %1256, %v1253
        %v1258 = vpop.permute.xlu0 %1257
        %1261 = vset.pattern.permute.xlu0 0
        %1262 = vperm.xlu0 %1261, %v1254
        %v1263 = vpop.permute.xlu0 %1262
        %v1265 = vmul.f32 %v1258, %v1250
        %v1266 = vmul.f32 %v1263, %v1252
        %v1268 = vrot.slane %v1265, 1
        %v1270 = vadd.f32 %v1265, %v1268
        %v1271 = vrot.slane %v1265, 2
        %v1273 = vadd.f32 %v1270, %v1271
        %v1274 = vrot.slane %v1265, 3
        %v1276 = vadd.f32 %v1273, %v1274
        %v1277 = vrot.slane %v1265, 4
        %v1279 = vadd.f32 %v1276, %v1277
        %v1280 = vrot.slane %v1265, 5
        %v1282 = vadd.f32 %v1279, %v1280
        %v1283 = vrot.slane %v1265, 6
        %v1285 = vadd.f32 %v1282, %v1283
        %v1286 = vrot.slane %v1265, 7
        %v1288 = vadd.f32 %v1285, %v1286
        %v1289 = vadd.f32 %v1288, %v1266
        %v1290 = vlaneseq
        %v1291 = vshrl.u32 %v1290, 7
        %v1292 = vsub.s32 0, %v1291
        %v1293 = vrot.slane %v1289, %v1292
        %v1294 = vmul.f32 %v235, %v1293
        %1295 = vst.msk [vmem:[%s230] sm:$0xf] %vm244, %v1294
        %s1296 = sand.u32 %s138, 1
        %s1297 = scalar_lea.sflag [#allocation5], %s1296
        %s1298 = sand.u32 %s138, 1
        %s1299 = smul.addr %s1298, 4
        %s1300 = scalar_lea.vmem [#allocation6], %s1299
        // Predicated region
        $region45: #{_lambda_.1} parent=39 // pred_check
          %p1301 = pneg %p148
        $region46: #{_lambda_.1} parent=39 // pred_check_branch
          %1303 = sbr.rel (%p1301) target = $region48
        $region47: #{_lambda_.1} parent=39 // pred_region
          %s1305 = ssub.s32 64, 64
          %1306 = vsyncadd %s1297, %s1305
          %s1307 = smul.addr %s20, 64
          %s1308 = scalar_lea.hbm %s5, %s1307
          %s1310 = sshll.u32 %s1300, 4
          %s1311 = int_to_ptr.vmem [resolvable:$true] %s1310
          %1313 = dma.vmem_to_hbm [thread:$0]  %s1311, 64, %s1308, %s1297
        $region48: #{_lambda_.1} parent=39 // pred_fallthru
          _
      $region40: #{_lambda_.1} parent=5 // pred_fallthru
        _
      %p1314 = scmp.le.s32.totalorder 2, %s15
      // Predicated region
      $region49: #{_lambda_.1} parent=5 // pred_check
        %p1315 = pneg %p1314
      $region50: #{_lambda_.1} parent=5 // pred_check_branch
        %1317 = sbr.rel (%p1315) target = $region52
      $region51: #{_lambda_.1} parent=5 // pred_region
        %s1318 = ssub.s32 %s15, 2
        // Predicated region
        $region53: #{_lambda_.1} parent=51 // pred_check
          %p1319 = pneg %p154
        $region54: #{_lambda_.1} parent=51 // pred_check_branch
          %1321 = sbr.rel (%p1319) target = $region56
        $region55: #{_lambda_.1} parent=51 // pred_region
          %s1322 = sand.u32 %s139, 1
          %s1323 = scalar_lea.sflag [#allocation5], %s1322
          %s1324 = sand.u32 %s139, 1
          %s1325 = smul.addr %s1324, 4
          %s1326 = scalar_lea.vmem [#allocation6], %s1325
          %1327 = dma.done %s1323, 64
        $region56: #{_lambda_.1} parent=51 // pred_fallthru
          _
      $region52: #{_lambda_.1} parent=5 // pred_fallthru
        _
    $region6: #{_lambda_.1} parent=1 // loop_footer
      %s19 = sadd.s32 1, %s15
    $region7: #{_lambda_.1} parent=1 // loop_footer_branch
      %14 = sbr.rel target = $region3
    $region8: #{_lambda_.1} parent=1 // loop_exit
      _
    %1328 = vsyncpa [#allocation4], 1
    %s1329 = scalar_lea.sflag [#allocation4], 1
    %1330 = vsyncpa %s1329, 1
    %1331 = vsyncpa [#allocation5], 1
    %s1332 = scalar_lea.sflag [#allocation5], 1
    %1333 = vsyncpa %s1332, 1

</llo_original>
